<compile_context>
chip_gen: v7x
topology: tpu7x:2x2x1
jax: 0.10.0
libtpu: 0.0.40
codegen_flags: <defaults>
</compile_context>

<pallas_src>
import jax
import jax.numpy as jnp
from jax import lax
from jax.experimental import pallas as pl
from jax.experimental.pallas import tpu as pltpu


def _kmeans_kernel(xt_ref, cs_ref, c2_ref, idx_ref, sums_ref, cnt_ref, loss_ref):
    j = pl.program_id(1)

    # ---- init resident accumulators at the start of each core's chunk ------
    @pl.when(j == 0)
    def _init():
        sums_ref[...] = jnp.zeros_like(sums_ref)
        cnt_ref[...] = jnp.zeros_like(cnt_ref)
        loss_ref[...] = jnp.zeros_like(loss_ref)

    xt = xt_ref[...]                     # (D, TN) f32, dense (D on sublanes)
    cs = cs_ref[...]                     # (K, D)  == -2 * cluster
    c2 = c2_ref[...]                     # (K, 1)  == ||cluster||^2 (unscaled)

    # dist_no_x2[k, n] = -2 x_n . c_k + ||c_k||^2.
    # |x_n|^2 is omitted (it does not change the argmin); it is added to the
    # loss separately.  cs @ xt is the MXU-natural (M,K)x(K,N) orientation and
    # the MXU is otherwise idle here, so HIGHEST precision is effectively free.
    g = lax.dot_general(cs, xt, (((1,), (0,)), ((), ())),
                        preferred_element_type=jnp.float32,
                        precision=lax.Precision.HIGHEST)           # (K, TN)
    dist = g + c2                                                   # (K, TN)
    K = dist.shape[0]

    # min over the K(=8) sublanes: full-width vregs, sublane reduction.
    best_d = jnp.min(dist, axis=0, keepdims=True)                   # (1, TN)

    # first-index argmin: smallest k whose distance equals the minimum.
    k_ids = lax.broadcasted_iota(jnp.int32, dist.shape, 0)          # (K, TN)
    k_or_big = jnp.where(dist == best_d,
                         k_ids.astype(jnp.float32), jnp.float32(K))
    best_k = jnp.min(k_or_big, axis=0, keepdims=True).astype(jnp.int32)  # (1, TN)

    idx_ref[...] = best_k                                           # lane-dense store

    # training-path side effect: per-cluster counts and coordinate sums.
    onehot = (k_ids == best_k).astype(jnp.float32)                  # (K, TN)
    cnt_ref[...] += jnp.sum(onehot, axis=1, keepdims=True)          # (K, 1)

    # Per-cluster sums: K masked lane reductions of the dense (D, TN) tile.
    cols = []
    for k in range(K):
        xm = jnp.where(best_k == k, xt, 0.0)                        # (D, TN)
        cols.append(jnp.sum(xm, axis=1, keepdims=True))             # (D, 1)
    sums_ref[...] += jnp.concatenate(cols, axis=1)                  # (D, K)

    # running (un-normalized) loss for this core's chunk:
    #   sum_n |x_n|^2 + sum_n min_k(-2 x_n.c_k + |c_k|^2)
    loss_ref[...] += jnp.sum(xt * xt) + jnp.sum(best_d)


# --------------------------------------------------------------------------- #
# Tiling helpers
# --------------------------------------------------------------------------- #

_VMEM_LIMIT = 48 * 1024 * 1024        # explicit scoped-VMEM request (< v7x 64 MiB)
_TILE_VMEM_BUDGET = 28 * 1024 * 1024  # budget for per-tile buffers + temporaries


def _tile_cap(d, k, budget_bytes=_TILE_VMEM_BUDGET):
    """Largest lane-multiple tile that keeps the per-step VMEM footprint sane.

    Per point (f32): x tile double-buffered (2*4*d) + one live (d, tn) masked
    intermediate (4*d) + ~5 (k, tn) temporaries (g, dist, iota, compare,
    onehot) + double-buffered idx output.
    """
    per_point = 4 * (3 * d + 5 * k + 2)
    cap = budget_bytes // per_point
    return max(128, (cap // 128) * 128)


def _partition(n, want_tn, want_p):
    """Return (P, inner, tn) with P*inner*tn == n and tn % 128 == 0 (or tn==n)."""
    for p in range(max(1, want_p), 0, -1):
        if n % p:
            continue
        chunk = n // p
        if chunk % 128:
            continue
        tn = max(128, (min(want_tn, chunk) // 128) * 128)
        while chunk % tn:
            tn -= 128
        return p, chunk // tn, tn
    return 1, 1, n                       # ragged N: one full-array tile


# --------------------------------------------------------------------------- #
# Wrapper
# --------------------------------------------------------------------------- #

def kmodel_forward(x, cluster, *, tile_n=32768, num_parallel=2,
                   x_is_transposed=False):
    """Pallas implementation of Kmodel.forward.

    Returns (idx, loss, new_cluster_sums, new_cluster_num)."""
    cluster = jnp.asarray(cluster, jnp.float32)
    if x_is_transposed:
        xt = jnp.asarray(x, jnp.float32)          # (D, N) feature-major
        D, N = xt.shape
    else:
        x = jnp.asarray(x, jnp.float32)           # (N, D) point-major (torch layout)
        N, D = x.shape
        xt = x.T                                  # one-time relayout outside the kernel
    K, D2 = cluster.shape
    assert D == D2

    tn_cap = _tile_cap(D, K)
    P, inner, tn = _partition(N, min(tile_n, tn_cap), num_parallel)

    # Tiny parameter setup, done once in the wrapper (not per tile):
    cs = (-2.0) * cluster                                       # (K, D)
    c2 = jnp.sum(cluster * cluster, axis=1, keepdims=True)      # (K, 1), UNscaled

    out_shape = (
        jax.ShapeDtypeStruct((1, N), jnp.int32),        # idx (lane-dense row)
        jax.ShapeDtypeStruct((P, D, K), jnp.float32),   # per-core cluster sums (D-major)
        jax.ShapeDtypeStruct((P, K, 1), jnp.float32),   # per-core cluster counts
        jax.ShapeDtypeStruct((P, 1, 1), jnp.float32),   # per-core un-normalized loss
    )

    cost = pl.CostEstimate(
        flops=4 * N * K * D,                 # distance matmul + masked sums
        transcendentals=0,
        bytes_accessed=N * D * 4 + N * 4 + 2 * K * D * 4)

    idx2d, sums_p, cnt_p, loss_p = pl.pallas_call(
        _kmeans_kernel,
        out_shape=out_shape,
        grid_spec=pltpu.PrefetchScalarGridSpec(
            num_scalar_prefetch=0,
            grid=(P, inner),
            in_specs=[
                pl.BlockSpec((D, tn), lambda p, j: (0, p * inner + j)),  # x tile (dense)
                pl.BlockSpec((K, D), lambda p, j: (0, 0)),               # -2*cluster
                pl.BlockSpec((K, 1), lambda p, j: (0, 0)),               # ||c||^2
            ],
            out_specs=[
                pl.BlockSpec((1, tn), lambda p, j: (0, p * inner + j)),  # idx tile
                pl.BlockSpec((None, D, K), lambda p, j: (p, 0, 0)),      # sums acc
                pl.BlockSpec((None, K, 1), lambda p, j: (p, 0, 0)),      # counts acc
                pl.BlockSpec((None, 1, 1), lambda p, j: (p, 0, 0)),      # loss acc
            ],
        ),
        compiler_params=pltpu.CompilerParams(
            dimension_semantics=("parallel", "arbitrary"),
            vmem_limit_bytes=_VMEM_LIMIT),
        cost_estimate=cost,
    )(xt, cs, c2)

    idx = idx2d.reshape(N)
    new_cluster = jnp.sum(sums_p, axis=0).T           # (K, D)
    new_cluster_num = jnp.sum(cnt_p, axis=0)[:, 0]    # (K,)  (f32; exact < 2^24/clstr)
    loss = jnp.sum(loss_p) / jnp.float32(N)
    return idx, loss, new_cluster, new_cluster_num


if __name__ == "__main__":
    # Small shapes consistent with the module: ncluster=8, ndim=32, N=512 points.
    # tile_n=128 is passed explicitly so the demo exercises the multi-tile
    # accumulation path AND the 2-way parallel partial-output combine.
    N, D, K = 512, 32, 8
    key = jax.random.PRNGKey(0)
    kx, kc = jax.random.split(key)
    x = jax.random.normal(kx, (N, D), dtype=jnp.float32)
    # cfg.dataset is None => cluster = zeros(K, D); use deterministic random
    # init instead so the assignment is non-degenerate for testing.
    cluster = jax.random.normal(kc, (K, D), dtype=jnp.float32)

    idx, loss, new_cluster, new_cluster_num = kmodel_forward(x, cluster, tile_n=128)
    jax.block_until_ready((idx, loss, new_cluster, new_cluster_num))

    # Pure-JAX reference (same semantics as the torch data2cluster path).
    d = jnp.sum((x[:, None, :] - cluster[None, :, :]) ** 2, axis=-1)   # (N, K)
    ref_idx = jnp.argmin(d, axis=1).astype(jnp.int32)
    ref_loss = jnp.min(d, axis=1).mean()
    onehot = (ref_idx[:, None] == jnp.arange(K)[None, :]).astype(jnp.float32)
    ref_sums = onehot.T @ x
    ref_counts = onehot.sum(0)

    assert jnp.array_equal(idx, ref_idx), "idx mismatch"
    assert jnp.allclose(loss, ref_loss, rtol=1e-4, atol=1e-4), "loss mismatch"
    assert jnp.allclose(new_cluster, ref_sums, rtol=1e-4, atol=1e-3), "sum mismatch"
    assert jnp.allclose(new_cluster_num, ref_counts), "count mismatch"

    # TODO(synk): Kmodel.update() (dead-cluster re-init from a DataLoader) is
    # host-side bookkeeping with data-dependent control flow; not a kernel.
    print("KERNEL_OK")
</pallas_src>

<mosaic_0001>
module attributes {stable_mosaic.version = 11 : i64} {
  func.func @_kmeans_kernel(%arg0: i32, %arg1: i32, %arg2: memref<32x128xf32, #tpu.memory_space<vmem>>, %arg3: memref<8x32xf32, #tpu.memory_space<vmem>>, %arg4: memref<8x1xf32, #tpu.memory_space<vmem>>, %arg5: memref<1x128xi32, #tpu.memory_space<vmem>>, %arg6: memref<1x32x8xf32, #tpu.memory_space<vmem>>, %arg7: memref<1x8x1xf32, #tpu.memory_space<vmem>>, %arg8: memref<1x1x1xf32, #tpu.memory_space<vmem>>) attributes {dimension_semantics = [#tpu.dimension_semantics<parallel>, #tpu.dimension_semantics<arbitrary>], iteration_bounds = array<i64: 2, 2>, scalar_prefetch = 0 : i64, scratch_operands = 0 : i64, tpu.core_type = #tpu.core_type<tc>, window_params = [{transform_indices = @transform_0, window_bounds = array<i64: 32, 128>}, {pipeline_mode = #tpu.pipeline_mode<synchronous>, transform_indices = @transform_1, window_bounds = array<i64: 8, 32>}, {pipeline_mode = #tpu.pipeline_mode<synchronous>, transform_indices = @transform_2, window_bounds = array<i64: 8, 1>}, {transform_indices = @transform_3, window_bounds = array<i64: 1, 128>}, {transform_indices = @transform_4, window_bounds = array<i64: 1, 32, 8>}, {transform_indices = @transform_5, window_bounds = array<i64: 1, 8, 1>}, {transform_indices = @transform_6, window_bounds = array<i64: 1, 1, 1>}]} {
    %c0_i32 = arith.constant 0 : i32
    %0 = arith.cmpi eq, %arg1, %c0_i32 : i32
    %1 = arith.extui %0 : i1 to i32
    %c0_i32_0 = arith.constant 0 : i32
    %2 = arith.cmpi ne, %1, %c0_i32_0 : i32
    scf.if %2 {
      %cst_49 = arith.constant 0.000000e+00 : f32
      %121 = vector.broadcast %cst_49 : f32 to vector<32x8xf32>
      %c0_50 = arith.constant 0 : index
      %c0_51 = arith.constant 0 : index
      %c0_52 = arith.constant 0 : index
      %122 = vector.load %arg6[%c0_50, %c0_51, %c0_52] : memref<1x32x8xf32, #tpu.memory_space<vmem>>, vector<1x32x8xf32>
      %123 = vector.shape_cast %122 : vector<1x32x8xf32> to vector<32x8xf32>
      %124 = vector.shape_cast %121 : vector<32x8xf32> to vector<1x32x8xf32>
      tpu.vector_store %arg6[%c0_50, %c0_51, %c0_52], %124 {strides = array<i32>} : memref<1x32x8xf32, #tpu.memory_space<vmem>>, vector<1x32x8xf32>,
      %cst_53 = arith.constant 0.000000e+00 : f32
      %125 = vector.broadcast %cst_53 : f32 to vector<8x1xf32>
      %c0_54 = arith.constant 0 : index
      %c0_55 = arith.constant 0 : index
      %c0_56 = arith.constant 0 : index
      %126 = vector.load %arg7[%c0_54, %c0_55, %c0_56] : memref<1x8x1xf32, #tpu.memory_space<vmem>>, vector<1x8x1xf32>
      %127 = vector.shape_cast %126 : vector<1x8x1xf32> to vector<8x1xf32>
      %128 = vector.shape_cast %125 : vector<8x1xf32> to vector<1x8x1xf32>
      tpu.vector_store %arg7[%c0_54, %c0_55, %c0_56], %128 {strides = array<i32>} : memref<1x8x1xf32, #tpu.memory_space<vmem>>, vector<1x8x1xf32>,
      %cst_57 = arith.constant 0.000000e+00 : f32
      %129 = vector.broadcast %cst_57 : f32 to vector<1x1xf32>
      %c0_58 = arith.constant 0 : index
      %c0_59 = arith.constant 0 : index
      %c0_60 = arith.constant 0 : index
      %130 = vector.load %arg8[%c0_58, %c0_59, %c0_60] : memref<1x1x1xf32, #tpu.memory_space<vmem>>, vector<1x1x1xf32>
      %131 = vector.shape_cast %130 : vector<1x1x1xf32> to vector<1x1xf32>
      %132 = vector.shape_cast %129 : vector<1x1xf32> to vector<1x1x1xf32>
      tpu.vector_store %arg8[%c0_58, %c0_59, %c0_60], %132 {strides = array<i32>} : memref<1x1x1xf32, #tpu.memory_space<vmem>>, vector<1x1x1xf32>,
    } else {
    }
    %c0 = arith.constant 0 : index
    %c0_1 = arith.constant 0 : index
    %3 = vector.load %arg2[%c0, %c0_1] : memref<32x128xf32, #tpu.memory_space<vmem>>, vector<32x128xf32>
    %c0_2 = arith.constant 0 : index
    %c0_3 = arith.constant 0 : index
    %4 = vector.load %arg3[%c0_2, %c0_3] : memref<8x32xf32, #tpu.memory_space<vmem>>, vector<8x32xf32>
    %c0_4 = arith.constant 0 : index
    %c0_5 = arith.constant 0 : index
    %5 = vector.load %arg4[%c0_4, %c0_5] : memref<8x1xf32, #tpu.memory_space<vmem>>, vector<8x1xf32>
    %cst = arith.constant dense<0.000000e+00> : vector<8x128xf32>
    %6 = tpu.matmul %4, %3, %cst {dimension_numbers = #tpu.dot_dimension_numbers<[1], [0], [0], [1], [0, 0, 1, 1], [], []>, precision = #tpu.contract_precision<fp32>} : vector<8x32xf32>, vector<32x128xf32>, vector<8x128xf32> -> vector<8x128xf32>
    %7 = vector.broadcast %5 : vector<8x1xf32> to vector<8x128xf32>
    %8 = arith.addf %6, %7 : vector<8x128xf32>
    %cst_6 = arith.constant dense<0x7F800000> : vector<128xf32>
    %9 = vector.multi_reduction <minimumf>, %8, %cst_6 [0] : vector<8x128xf32> to vector<128xf32>
    %10 = vector.shape_cast %9 : vector<128xf32> to vector<1x128xf32>
    %11 = tpu.iota {dimensions = array<i32: 0>} : vector<8x128xi32>
    %12 = vector.broadcast %10 : vector<1x128xf32> to vector<8x128xf32>
    %13 = arith.cmpf oeq, %8, %12 : vector<8x128xf32>
    %14 = arith.sitofp %11 : vector<8x128xi32> to vector<8x128xf32>
    %cst_7 = arith.constant 8.000000e+00 : f32
    %15 = vector.broadcast %cst_7 : f32 to vector<8x128xf32>
    %16 = arith.select %13, %14, %15 : vector<8x128xi1>, vector<8x128xf32>
    %cst_8 = arith.constant dense<0x7F800000> : vector<128xf32>
    %17 = vector.multi_reduction <minimumf>, %16, %cst_8 [0] : vector<8x128xf32> to vector<128xf32>
    %18 = vector.shape_cast %17 : vector<128xf32> to vector<1x128xf32>
    %19 = arith.fptosi %18 : vector<1x128xf32> to vector<1x128xi32>
    %c0_9 = arith.constant 0 : index
    %c0_10 = arith.constant 0 : index
    %20 = vector.load %arg5[%c0_9, %c0_10] : memref<1x128xi32, #tpu.memory_space<vmem>>, vector<1x128xi32>
    tpu.vector_store %arg5[%c0_9, %c0_10], %19 {strides = array<i32>} : memref<1x128xi32, #tpu.memory_space<vmem>>, vector<1x128xi32>,
    %21 = vector.broadcast %19 : vector<1x128xi32> to vector<8x128xi32>
    %22 = arith.cmpi eq, %11, %21 : vector<8x128xi32>
    %23 = arith.extui %22 : vector<8x128xi1> to vector<8x128xi32>
    %24 = arith.sitofp %23 : vector<8x128xi32> to vector<8x128xf32>
    %c0_11 = arith.constant 0 : index
    %c0_12 = arith.constant 0 : index
    %c0_13 = arith.constant 0 : index
    %25 = vector.load %arg7[%c0_11, %c0_12, %c0_13] : memref<1x8x1xf32, #tpu.memory_space<vmem>>, vector<1x8x1xf32>
    %26 = vector.shape_cast %25 : vector<1x8x1xf32> to vector<8x1xf32>
    %cst_14 = arith.constant dense<0.000000e+00> : vector<8xf32>
    %27 = vector.multi_reduction <add>, %24, %cst_14 [1] : vector<8x128xf32> to vector<8xf32>
    %28 = vector.shape_cast %27 : vector<8xf32> to vector<8x1xf32>
    %29 = arith.addf %26, %28 : vector<8x1xf32>
    %c0_15 = arith.constant 0 : index
    %c0_16 = arith.constant 0 : index
    %c0_17 = arith.constant 0 : index
    %30 = vector.load %arg7[%c0_15, %c0_16, %c0_17] : memref<1x8x1xf32, #tpu.memory_space<vmem>>, vector<1x8x1xf32>
    %31 = vector.shape_cast %30 : vector<1x8x1xf32> to vector<8x1xf32>
    %32 = vector.shape_cast %29 : vector<8x1xf32> to vector<1x8x1xf32>
    tpu.vector_store %arg7[%c0_15, %c0_16, %c0_17], %32 {strides = array<i32>} : memref<1x8x1xf32, #tpu.memory_space<vmem>>, vector<1x8x1xf32>,
    %c0_i32_18 = arith.constant 0 : i32
    %33 = vector.broadcast %c0_i32_18 : i32 to vector<1x128xi32>
    %34 = arith.cmpi eq, %19, %33 : vector<1x128xi32>
    %cst_19 = arith.constant 0.000000e+00 : f32
    %35 = vector.shape_cast %34 : vector<1x128xi1> to vector<1x128xi1>
    %36 = vector.broadcast %35 : vector<1x128xi1> to vector<32x128xi1>
    %37 = vector.broadcast %cst_19 : f32 to vector<32x128xf32>
    %38 = arith.select %36, %3, %37 : vector<32x128xi1>, vector<32x128xf32>
    %cst_20 = arith.constant dense<0.000000e+00> : vector<32xf32>
    %39 = vector.multi_reduction <add>, %38, %cst_20 [1] : vector<32x128xf32> to vector<32xf32>
    %40 = vector.shape_cast %39 : vector<32xf32> to vector<32x1xf32>
    %c1_i32 = arith.constant 1 : i32
    %41 = vector.broadcast %c1_i32 : i32 to vector<1x128xi32>
    %42 = arith.cmpi eq, %19, %41 : vector<1x128xi32>
    %cst_21 = arith.constant 0.000000e+00 : f32
    %43 = vector.shape_cast %42 : vector<1x128xi1> to vector<1x128xi1>
    %44 = vector.broadcast %43 : vector<1x128xi1> to vector<32x128xi1>
    %45 = vector.broadcast %cst_21 : f32 to vector<32x128xf32>
    %46 = arith.select %44, %3, %45 : vector<32x128xi1>, vector<32x128xf32>
    %cst_22 = arith.constant dense<0.000000e+00> : vector<32xf32>
    %47 = vector.multi_reduction <add>, %46, %cst_22 [1] : vector<32x128xf32> to vector<32xf32>
    %48 = vector.shape_cast %47 : vector<32xf32> to vector<32x1xf32>
    %c2_i32 = arith.constant 2 : i32
    %49 = vector.broadcast %c2_i32 : i32 to vector<1x128xi32>
    %50 = arith.cmpi eq, %19, %49 : vector<1x128xi32>
    %cst_23 = arith.constant 0.000000e+00 : f32
    %51 = vector.shape_cast %50 : vector<1x128xi1> to vector<1x128xi1>
    %52 = vector.broadcast %51 : vector<1x128xi1> to vector<32x128xi1>
    %53 = vector.broadcast %cst_23 : f32 to vector<32x128xf32>
    %54 = arith.select %52, %3, %53 : vector<32x128xi1>, vector<32x128xf32>
    %cst_24 = arith.constant dense<0.000000e+00> : vector<32xf32>
    %55 = vector.multi_reduction <add>, %54, %cst_24 [1] : vector<32x128xf32> to vector<32xf32>
    %56 = vector.shape_cast %55 : vector<32xf32> to vector<32x1xf32>
    %c3_i32 = arith.constant 3 : i32
    %57 = vector.broadcast %c3_i32 : i32 to vector<1x128xi32>
    %58 = arith.cmpi eq, %19, %57 : vector<1x128xi32>
    %cst_25 = arith.constant 0.000000e+00 : f32
    %59 = vector.shape_cast %58 : vector<1x128xi1> to vector<1x128xi1>
    %60 = vector.broadcast %59 : vector<1x128xi1> to vector<32x128xi1>
    %61 = vector.broadcast %cst_25 : f32 to vector<32x128xf32>
    %62 = arith.select %60, %3, %61 : vector<32x128xi1>, vector<32x128xf32>
    %cst_26 = arith.constant dense<0.000000e+00> : vector<32xf32>
    %63 = vector.multi_reduction <add>, %62, %cst_26 [1] : vector<32x128xf32> to vector<32xf32>
    %64 = vector.shape_cast %63 : vector<32xf32> to vector<32x1xf32>
    %c4_i32 = arith.constant 4 : i32
    %65 = vector.broadcast %c4_i32 : i32 to vector<1x128xi32>
    %66 = arith.cmpi eq, %19, %65 : vector<1x128xi32>
    %cst_27 = arith.constant 0.000000e+00 : f32
    %67 = vector.shape_cast %66 : vector<1x128xi1> to vector<1x128xi1>
    %68 = vector.broadcast %67 : vector<1x128xi1> to vector<32x128xi1>
    %69 = vector.broadcast %cst_27 : f32 to vector<32x128xf32>
    %70 = arith.select %68, %3, %69 : vector<32x128xi1>, vector<32x128xf32>
    %cst_28 = arith.constant dense<0.000000e+00> : vector<32xf32>
    %71 = vector.multi_reduction <add>, %70, %cst_28 [1] : vector<32x128xf32> to vector<32xf32>
    %72 = vector.shape_cast %71 : vector<32xf32> to vector<32x1xf32>
    %c5_i32 = arith.constant 5 : i32
    %73 = vector.broadcast %c5_i32 : i32 to vector<1x128xi32>
    %74 = arith.cmpi eq, %19, %73 : vector<1x128xi32>
    %cst_29 = arith.constant 0.000000e+00 : f32
    %75 = vector.shape_cast %74 : vector<1x128xi1> to vector<1x128xi1>
    %76 = vector.broadcast %75 : vector<1x128xi1> to vector<32x128xi1>
    %77 = vector.broadcast %cst_29 : f32 to vector<32x128xf32>
    %78 = arith.select %76, %3, %77 : vector<32x128xi1>, vector<32x128xf32>
    %cst_30 = arith.constant dense<0.000000e+00> : vector<32xf32>
    %79 = vector.multi_reduction <add>, %78, %cst_30 [1] : vector<32x128xf32> to vector<32xf32>
    %80 = vector.shape_cast %79 : vector<32xf32> to vector<32x1xf32>
    %c6_i32 = arith.constant 6 : i32
    %81 = vector.broadcast %c6_i32 : i32 to vector<1x128xi32>
    %82 = arith.cmpi eq, %19, %81 : vector<1x128xi32>
    %cst_31 = arith.constant 0.000000e+00 : f32
    %83 = vector.shape_cast %82 : vector<1x128xi1> to vector<1x128xi1>
    %84 = vector.broadcast %83 : vector<1x128xi1> to vector<32x128xi1>
    %85 = vector.broadcast %cst_31 : f32 to vector<32x128xf32>
    %86 = arith.select %84, %3, %85 : vector<32x128xi1>, vector<32x128xf32>
    %cst_32 = arith.constant dense<0.000000e+00> : vector<32xf32>
    %87 = vector.multi_reduction <add>, %86, %cst_32 [1] : vector<32x128xf32> to vector<32xf32>
    %88 = vector.shape_cast %87 : vector<32xf32> to vector<32x1xf32>
    %c7_i32 = arith.constant 7 : i32
    %89 = vector.broadcast %c7_i32 : i32 to vector<1x128xi32>
    %90 = arith.cmpi eq, %19, %89 : vector<1x128xi32>
    %cst_33 = arith.constant 0.000000e+00 : f32
    %91 = vector.shape_cast %90 : vector<1x128xi1> to vector<1x128xi1>
    %92 = vector.broadcast %91 : vector<1x128xi1> to vector<32x128xi1>
    %93 = vector.broadcast %cst_33 : f32 to vector<32x128xf32>
    %94 = arith.select %92, %3, %93 : vector<32x128xi1>, vector<32x128xf32>
    %cst_34 = arith.constant dense<0.000000e+00> : vector<32xf32>
    %95 = vector.multi_reduction <add>, %94, %cst_34 [1] : vector<32x128xf32> to vector<32xf32>
    %96 = vector.shape_cast %95 : vector<32xf32> to vector<32x1xf32>
    %c0_35 = arith.constant 0 : index
    %c0_36 = arith.constant 0 : index
    %c0_37 = arith.constant 0 : index
    %97 = vector.load %arg6[%c0_35, %c0_36, %c0_37] : memref<1x32x8xf32, #tpu.memory_space<vmem>>, vector<1x32x8xf32>
    %98 = vector.shape_cast %97 : vector<1x32x8xf32> to vector<32x8xf32>
    %99 = tpu.concatenate %40, %48, %56, %64, %72, %80, %88, %96 in 1 : vector<32x1xf32>, vector<32x1xf32>, vector<32x1xf32>, vector<32x1xf32>, vector<32x1xf32>, vector<32x1xf32>, vector<32x1xf32>, vector<32x1xf32> -> vector<32x8xf32>
    %100 = arith.addf %98, %99 : vector<32x8xf32>
    %c0_38 = arith.constant 0 : index
    %c0_39 = arith.constant 0 : index
    %c0_40 = arith.constant 0 : index
    %101 = vector.load %arg6[%c0_38, %c0_39, %c0_40] : memref<1x32x8xf32, #tpu.memory_space<vmem>>, vector<1x32x8xf32>
    %102 = vector.shape_cast %101 : vector<1x32x8xf32> to vector<32x8xf32>
    %103 = vector.shape_cast %100 : vector<32x8xf32> to vector<1x32x8xf32>
    tpu.vector_store %arg6[%c0_38, %c0_39, %c0_40], %103 {strides = array<i32>} : memref<1x32x8xf32, #tpu.memory_space<vmem>>, vector<1x32x8xf32>,
    %c0_41 = arith.constant 0 : index
    %c0_42 = arith.constant 0 : index
    %c0_43 = arith.constant 0 : index
    %104 = vector.load %arg8[%c0_41, %c0_42, %c0_43] : memref<1x1x1xf32, #tpu.memory_space<vmem>>, vector<1x1x1xf32>
    %105 = vector.shape_cast %104 : vector<1x1x1xf32> to vector<1x1xf32>
    %106 = arith.mulf %3, %3 : vector<32x128xf32>
    %107 = vector.shape_cast %106 : vector<32x128xf32> to vector<1x32x128xf32>
    %cst_44 = arith.constant dense<0.000000e+00> : vector<1xf32>
    %108 = vector.multi_reduction <add>, %107, %cst_44 [1, 2] : vector<1x32x128xf32> to vector<1xf32>
    %109 = vector.shape_cast %108 : vector<1xf32> to vector<1x1x1xf32>
    %110 = vector.extract %109[0, 0, 0] : f32 from vector<1x1x1xf32>
    %111 = vector.shape_cast %10 : vector<1x128xf32> to vector<1x1x128xf32>
    %cst_45 = arith.constant dense<0.000000e+00> : vector<1xf32>
    %112 = vector.multi_reduction <add>, %111, %cst_45 [1, 2] : vector<1x1x128xf32> to vector<1xf32>
    %113 = vector.shape_cast %112 : vector<1xf32> to vector<1x1x1xf32>
    %114 = vector.extract %113[0, 0, 0] : f32 from vector<1x1x1xf32>
    %115 = arith.addf %110, %114 : f32
    %116 = vector.broadcast %115 : f32 to vector<1x1xf32>
    %117 = arith.addf %105, %116 : vector<1x1xf32>
    %c0_46 = arith.constant 0 : index
    %c0_47 = arith.constant 0 : index
    %c0_48 = arith.constant 0 : index
    %118 = vector.load %arg8[%c0_46, %c0_47, %c0_48] : memref<1x1x1xf32, #tpu.memory_space<vmem>>, vector<1x1x1xf32>
    %119 = vector.shape_cast %118 : vector<1x1x1xf32> to vector<1x1xf32>
    %120 = vector.shape_cast %117 : vector<1x1xf32> to vector<1x1x1xf32>
    tpu.vector_store %arg8[%c0_46, %c0_47, %c0_48], %120 {strides = array<i32>} : memref<1x1x1xf32, #tpu.memory_space<vmem>>, vector<1x1x1xf32>,
    return
  }
  func.func @transform_0(%arg0: i32, %arg1: i32) -> (i32, i32) {
    %c2_i32 = arith.constant 2 : i32
    %0 = arith.muli %arg0, %c2_i32 : i32
    %1 = arith.addi %0, %arg1 : i32
    %c0_i32 = arith.constant 0 : i32
    %c0_i32_0 = arith.constant 0 : i32
    return %c0_i32, %1 : i32, i32
  }
  func.func @transform_1(%arg0: i32, %arg1: i32) -> (i32, i32) {
    %c0_i32 = arith.constant 0 : i32
    %c0_i32_0 = arith.constant 0 : i32
    %c0_i32_1 = arith.constant 0 : i32
    return %c0_i32, %c0_i32_0 : i32, i32
  }
  func.func @transform_2(%arg0: i32, %arg1: i32) -> (i32, i32) {
    %c0_i32 = arith.constant 0 : i32
    %c0_i32_0 = arith.constant 0 : i32
    %c0_i32_1 = arith.constant 0 : i32
    return %c0_i32, %c0_i32_0 : i32, i32
  }
  func.func @transform_3(%arg0: i32, %arg1: i32) -> (i32, i32) {
    %c2_i32 = arith.constant 2 : i32
    %0 = arith.muli %arg0, %c2_i32 : i32
    %1 = arith.addi %0, %arg1 : i32
    %c0_i32 = arith.constant 0 : i32
    %c0_i32_0 = arith.constant 0 : i32
    return %c0_i32, %1 : i32, i32
  }
  func.func @transform_4(%arg0: i32, %arg1: i32) -> (i32, i32, i32) {
    %c0_i32 = arith.constant 0 : i32
    %c0_i32_0 = arith.constant 0 : i32
    %c0_i32_1 = arith.constant 0 : i32
    return %arg0, %c0_i32, %c0_i32_0 : i32, i32, i32
  }
  func.func @transform_5(%arg0: i32, %arg1: i32) -> (i32, i32, i32) {
    %c0_i32 = arith.constant 0 : i32
    %c0_i32_0 = arith.constant 0 : i32
    %c0_i32_1 = arith.constant 0 : i32
    return %arg0, %c0_i32, %c0_i32_0 : i32, i32, i32
  }
  func.func @transform_6(%arg0: i32, %arg1: i32) -> (i32, i32, i32) {
    %c0_i32 = arith.constant 0 : i32
    %c0_i32_0 = arith.constant 0 : i32
    %c0_i32_1 = arith.constant 0 : i32
    return %arg0, %c0_i32, %c0_i32_0 : i32, i32, i32
  }
}

</mosaic_0001>

<llo_original>
// kernel: tpu_custom_call.1
$region0: #{tpu_custom_call.1}
  #allocation0 [shape = 'u32[]', space=smem, size = 0x4, offset = 0x4, fixed_abs, tag = 'smem constant byte address 0x4 - core index']
  #allocation1 [shape = 'u32[144,128]{1,0:T(1,128)}', space=vmem, size = 0x12000, scoped, tag = 'internal scratch']
  %s0 = inlined_call_operand.hbm [shape: f32[32,512], index: 0, kind: input, shape index: {}]
  %s1 = inlined_call_operand.vmem [shape: f32[8,32], index: 1, kind: input, shape index: {}]
  %s2 = inlined_call_operand.vmem [shape: f32[8,1], index: 2, kind: input, shape index: {}]
  %s3 = inlined_call_operand.hbm [shape: s32[1,512], index: 3, kind: output, shape index: {0}]
  %s4 = inlined_call_operand.vmem [shape: f32[2,32,8], index: 4, kind: output, shape index: {1}]
  %s5 = inlined_call_operand.vmem [shape: f32[2,8,1], index: 5, kind: output, shape index: {2}]
  %s6 = inlined_call_operand.vmem [shape: f32[2,1,1], index: 6, kind: output, shape index: {3}]
  %7 = xla_tuple %s3, %s4, %s5, %s6
  %s8 = sld [smem:[#allocation0]]
  $region77: #{tpu_custom_call.1} parent=0
    _
  %s10 = ssub.s32 1, %s8
  %s11 = scalar_select 0, %s10, %s8
  $region1: #{tpu_custom_call.1} parent=0
    #allocation2 [shape = 'u8[32768]{0}', space=vmem, size = 0x8000, scoped, tag = 'input window, operand 0']
    #allocation3 [shape = 's32[2]{0}', space=sflag, size = 0x8, scoped, tag = 'scoped memory for tpu_custom_call.1']
    #allocation4 [shape = 's32[2]{0}', space=sflag, size = 0x8, scoped, tag = 'scoped memory for tpu_custom_call.1']
    #allocation5 [shape = 'u8[1024]{0}', space=vmem, size = 0x400, scoped, tag = 'output window, operand 0']
    %12 = vsyncpa [#allocation3], 0
    %s13 = scalar_lea.sflag [#allocation3], 1
    %14 = vsyncpa %s13, 0
    %15 = vsyncpa [#allocation4], 0
    %s16 = scalar_lea.sflag [#allocation4], 1
    %17 = vsyncpa %s16, 0
    loop: start=0, step=1, limit=6
    $region2: #{tpu_custom_call.1} parent=1 // loop_pre_header
      _
    $region3: #{tpu_custom_call.1} parent=1 // loop_header
      %s19 = sphi 0, %s23
      %p20 = scmp.ge.s32.totalorder %s19, 6
      %s26 = sphi 0, %s38
      %s27 = sphi 0, %s34
      %s28 = sphi 0, %s26
      %s29 = sphi 0, %s27
      %s30 = sphi 0, %s28
      %s31 = sphi 0, %s29
      %s45 = sphi 0, %s47
      %s48 = sphi 0, %s45
      %s49 = sphi 0, %s48
      %s65 = sphi 0, %s49
      %s69 = sphi 0, %s69
      %s71 = sphi 0, %s69
      %s72 = sphi 0, %s71
      %s86 = sphi 0, %s72
      %s90 = sphi 0, %s90
      %s92 = sphi 0, %s90
      %s93 = sphi 0, %s92
      %s107 = sphi 0, %s93
      %s117 = sphi 0, %s119
      %s120 = sphi 0, %s117
      %s121 = sphi 0, %s120
      %s137 = sphi 0, %s121
      %s143 = sphi 0, %s145
      %s146 = sphi 0, %s143
      %s147 = sphi 0, %s146
      %s163 = sphi 0, %s147
      %s169 = sphi 0, %s171
      %s172 = sphi 0, %s169
      %s173 = sphi 0, %s172
      %s189 = sphi 0, %s173
      %s195 = sphi 0, %s197
      %s198 = sphi 0, %s195
      %s199 = sphi 0, %s198
      %s215 = sphi 0, %s199
    $region4: #{tpu_custom_call.1} parent=1 // loop_header_branch
      %22 = sbr.rel (%p20) target = $region8
    $region5: #{tpu_custom_call.1} parent=1 // loop_body
      %s24 = ssub.s32 %s19, 1
      %s25 = ssub.s32 %s19, 2
      %s32 = sadd.s32 1, %s27
      %p33 = scmp.ge.s32.totalorder %s32, 2
      %s34 = scalar_select %p33, 0, %s32
      %s35 = sadd.s32 1, %s26
      %s36 = scalar_select %p33, %s35, %s26
      %p37 = scmp.ge.s32.totalorder %s36, 2
      %s38 = scalar_select %p37, 0, %s36
      %s39 = smul.u32 %s26, 2
      %s40 = sadd.s32 %s39, %s27
      %s41 = smul.u32 %s38, 2
      %s42 = sadd.s32 %s41, %s34
      %s43 = ssub.s32 %s40, %s42
      %p44 = scmp.eq.s32.totalorder %s43, 0
      %s46 = sadd.s32 %s45, 1
      %s47 = scalar_select %p44, %s45, %s46
      %p50 = pneg %p44
      %p51 = scmp.eq.s32.totalorder %s19, 3
      %p52 = por %p50, %p51
      %p53 = scmp.ne.s32.totalorder %s45, %s48
      %p54 = scmp.eq.s32.totalorder %s19, 0
      %p55 = por %p53, %p54
      %p56 = scmp.ne.s32.totalorder %s45, %s48
      %p57 = scmp.eq.s32.totalorder %s24, 3
      %p58 = por %p56, %p57
      %p59 = scmp.ne.s32.totalorder %s48, %s49
      %p60 = scmp.eq.s32.totalorder %s24, 0
      %p61 = por %p59, %p60
      %p62 = scmp.ne.s32.totalorder %s48, %s49
      %p63 = scmp.eq.s32.totalorder %s25, 3
      %p64 = por %p62, %p63
      %p66 = scmp.ne.s32.totalorder %s49, %s65
      %p67 = scmp.eq.s32.totalorder %s25, 0
      %p68 = por %p66, %p67
      %s70 = sadd.s32 %s69, 1
      %p73 = scmp.eq.s32.totalorder %s19, 3
      %p74 = scmp.ne.s32.totalorder %s69, %s71
      %p75 = scmp.eq.s32.totalorder %s19, 0
      %p76 = por %p74, %p75
      %p77 = scmp.ne.s32.totalorder %s69, %s71
      %p78 = scmp.eq.s32.totalorder %s24, 3
      %p79 = por %p77, %p78
      %p80 = scmp.ne.s32.totalorder %s71, %s72
      %p81 = scmp.eq.s32.totalorder %s24, 0
      %p82 = por %p80, %p81
      %p83 = scmp.ne.s32.totalorder %s71, %s72
      %p84 = scmp.eq.s32.totalorder %s25, 3
      %p85 = por %p83, %p84
      %p87 = scmp.ne.s32.totalorder %s72, %s86
      %p88 = scmp.eq.s32.totalorder %s25, 0
      %p89 = por %p87, %p88
      %s91 = sadd.s32 %s90, 1
      %p94 = scmp.eq.s32.totalorder %s19, 3
      %p95 = scmp.ne.s32.totalorder %s90, %s92
      %p96 = scmp.eq.s32.totalorder %s19, 0
      %p97 = por %p95, %p96
      %p98 = scmp.ne.s32.totalorder %s90, %s92
      %p99 = scmp.eq.s32.totalorder %s24, 3
      %p100 = por %p98, %p99
      %p101 = scmp.ne.s32.totalorder %s92, %s93
      %p102 = scmp.eq.s32.totalorder %s24, 0
      %p103 = por %p101, %p102
      %p104 = scmp.ne.s32.totalorder %s92, %s93
      %p105 = scmp.eq.s32.totalorder %s25, 3
      %p106 = por %p104, %p105
      %p108 = scmp.ne.s32.totalorder %s93, %s107
      %p109 = scmp.eq.s32.totalorder %s25, 0
      %p110 = por %p108, %p109
      %s111 = smul.u32 %s26, 2
      %s112 = sadd.s32 %s111, %s27
      %s113 = smul.u32 %s38, 2
      %s114 = sadd.s32 %s113, %s34
      %s115 = ssub.s32 %s112, %s114
      %p116 = scmp.eq.s32.totalorder %s115, 0
      %s118 = sadd.s32 %s117, 1
      %s119 = scalar_select %p116, %s117, %s118
      %p122 = pneg %p116
      %p123 = scmp.eq.s32.totalorder %s19, 3
      %p124 = por %p122, %p123
      %p125 = scmp.ne.s32.totalorder %s117, %s120
      %p126 = scmp.eq.s32.totalorder %s19, 0
      %p127 = por %p125, %p126
      %p128 = scmp.ne.s32.totalorder %s117, %s120
      %p129 = scmp.eq.s32.totalorder %s24, 3
      %p130 = por %p128, %p129
      %p131 = scmp.ne.s32.totalorder %s120, %s121
      %p132 = scmp.eq.s32.totalorder %s24, 0
      %p133 = por %p131, %p132
      %p134 = scmp.ne.s32.totalorder %s120, %s121
      %p135 = scmp.eq.s32.totalorder %s25, 3
      %p136 = por %p134, %p135
      %p138 = scmp.ne.s32.totalorder %s121, %s137
      %p139 = scmp.eq.s32.totalorder %s25, 0
      %p140 = por %p138, %p139
      %s141 = ssub.s32 %s26, %s38
      %p142 = scmp.eq.s32.totalorder %s141, 0
      %s144 = sadd.s32 %s143, 1
      %s145 = scalar_select %p142, %s143, %s144
      %p148 = pneg %p142
      %p149 = scmp.eq.s32.totalorder %s19, 3
      %p150 = por %p148, %p149
      %p151 = scmp.ne.s32.totalorder %s143, %s146
      %p152 = scmp.eq.s32.totalorder %s19, 0
      %p153 = por %p151, %p152
      %p154 = scmp.ne.s32.totalorder %s143, %s146
      %p155 = scmp.eq.s32.totalorder %s24, 3
      %p156 = por %p154, %p155
      %p157 = scmp.ne.s32.totalorder %s146, %s147
      %p158 = scmp.eq.s32.totalorder %s24, 0
      %p159 = por %p157, %p158
      %p160 = scmp.ne.s32.totalorder %s146, %s147
      %p161 = scmp.eq.s32.totalorder %s25, 3
      %p162 = por %p160, %p161
      %p164 = scmp.ne.s32.totalorder %s147, %s163
      %p165 = scmp.eq.s32.totalorder %s25, 0
      %p166 = por %p164, %p165
      %s167 = ssub.s32 %s26, %s38
      %p168 = scmp.eq.s32.totalorder %s167, 0
      %s170 = sadd.s32 %s169, 1
      %s171 = scalar_select %p168, %s169, %s170
      %p174 = pneg %p168
      %p175 = scmp.eq.s32.totalorder %s19, 3
      %p176 = por %p174, %p175
      %p177 = scmp.ne.s32.totalorder %s169, %s172
      %p178 = scmp.eq.s32.totalorder %s19, 0
      %p179 = por %p177, %p178
      %p180 = scmp.ne.s32.totalorder %s169, %s172
      %p181 = scmp.eq.s32.totalorder %s24, 3
      %p182 = por %p180, %p181
      %p183 = scmp.ne.s32.totalorder %s172, %s173
      %p184 = scmp.eq.s32.totalorder %s24, 0
      %p185 = por %p183, %p184
      %p186 = scmp.ne.s32.totalorder %s172, %s173
      %p187 = scmp.eq.s32.totalorder %s25, 3
      %p188 = por %p186, %p187
      %p190 = scmp.ne.s32.totalorder %s173, %s189
      %p191 = scmp.eq.s32.totalorder %s25, 0
      %p192 = por %p190, %p191
      %s193 = ssub.s32 %s26, %s38
      %p194 = scmp.eq.s32.totalorder %s193, 0
      %s196 = sadd.s32 %s195, 1
      %s197 = scalar_select %p194, %s195, %s196
      %p200 = pneg %p194
      %p201 = scmp.eq.s32.totalorder %s19, 3
      %p202 = por %p200, %p201
      %p203 = scmp.ne.s32.totalorder %s195, %s198
      %p204 = scmp.eq.s32.totalorder %s19, 0
      %p205 = por %p203, %p204
      %p206 = scmp.ne.s32.totalorder %s195, %s198
      %p207 = scmp.eq.s32.totalorder %s24, 3
      %p208 = por %p206, %p207
      %p209 = scmp.ne.s32.totalorder %s198, %s199
      %p210 = scmp.eq.s32.totalorder %s24, 0
      %p211 = por %p209, %p210
      %p212 = scmp.ne.s32.totalorder %s198, %s199
      %p213 = scmp.eq.s32.totalorder %s25, 3
      %p214 = por %p212, %p213
      %p216 = scmp.ne.s32.totalorder %s199, %s215
      %p217 = scmp.eq.s32.totalorder %s25, 0
      %p218 = por %p216, %p217
      %p219 = scmp.le.s32.totalorder 1, %s19
      %p220 = scmp.lt.s32.totalorder %s19, 5
      %p221 = pnand %p219, %p220
      %p222 = pneg %p221
      // Predicated region
      $region9: #{tpu_custom_call.1} parent=5 // pred_check
        _
      $region10: #{tpu_custom_call.1} parent=5 // pred_check_branch
        %224 = sbr.rel (%p221) target = $region12
      $region11: #{tpu_custom_call.1} parent=5 // pred_region
        %s225 = ssub.s32 %s19, 1
        // Predicated region
        $region13: #{tpu_custom_call.1} parent=11 // pred_check
          %p226 = pneg %p82
        $region14: #{tpu_custom_call.1} parent=11 // pred_check_branch
          %228 = sbr.rel (%p226) target = $region16
        $region15: #{tpu_custom_call.1} parent=11 // pred_region
          _
        $region16: #{tpu_custom_call.1} parent=11 // pred_fallthru
          _
        // Predicated region
        $region17: #{tpu_custom_call.1} parent=11 // pred_check
          %p229 = pneg %p103
        $region18: #{tpu_custom_call.1} parent=11 // pred_check_branch
          %231 = sbr.rel (%p229) target = $region20
        $region19: #{tpu_custom_call.1} parent=11 // pred_region
          _
        $region20: #{tpu_custom_call.1} parent=11 // pred_fallthru
          _
      $region12: #{tpu_custom_call.1} parent=5 // pred_fallthru
        _
      %p232 = scmp.lt.s32.totalorder %s19, 4
      // Predicated region
      $region21: #{tpu_custom_call.1} parent=5 // pred_check
        %p233 = pneg %p232
      $region22: #{tpu_custom_call.1} parent=5 // pred_check_branch
        %235 = sbr.rel (%p233) target = $region24
      $region23: #{tpu_custom_call.1} parent=5 // pred_region
        // Predicated region
        $region25: #{tpu_custom_call.1} parent=23 // pred_check
          %p236 = pneg %p55
        $region26: #{tpu_custom_call.1} parent=23 // pred_check_branch
          %238 = sbr.rel (%p236) target = $region28
        $region27: #{tpu_custom_call.1} parent=23 // pred_region
          %s239 = sand.u32 %s45, 1
          %s240 = scalar_lea.sflag [#allocation3], %s239
          %s241 = sand.u32 %s45, 1
          %s242 = smul.addr %s241, 32
          %s243 = scalar_lea.vmem [#allocation2], %s242
          %s244 = smul.u32 %s26, 2
          %s245 = sadd.s32 %s244, %s27
          %s247 = ssub.s32 512, 512
          %248 = vsyncadd %s240, %s247
          %s249 = smul.addr %s245, 128
          %s250 = scalar_lea.hbm %s0, %s249
          %s251 = sshll.u32 %s243, 4
          %s252 = int_to_ptr.vmem [resolvable:$true] %s251
          %257 = dma.hbm_to_vmem [thread:$0]  %s250, 512, %s252, %s240, 512, 128, 8
        $region28: #{tpu_custom_call.1} parent=23 // pred_fallthru
          _
      $region24: #{tpu_custom_call.1} parent=5 // pred_fallthru
        _
      %p258 = scmp.le.s32.totalorder 1, %s19
      %p259 = scmp.lt.s32.totalorder %s19, 5
      %p260 = pnand %p258, %p259
      %p261 = pneg %p260
      // Predicated region
      $region29: #{tpu_custom_call.1} parent=5 // pred_check
        _
      $region30: #{tpu_custom_call.1} parent=5 // pred_check_branch
        %263 = sbr.rel (%p260) target = $region32
      $region31: #{tpu_custom_call.1} parent=5 // pred_region
        %s264 = ssub.s32 %s19, 1
        %s265 = sand.u32 %s48, 1
        %s266 = scalar_lea.sflag [#allocation3], %s265
        %s267 = sand.u32 %s48, 1
        %s268 = smul.addr %s267, 32
        %s269 = scalar_lea.vmem [#allocation2], %s268
        // Predicated region
        $region33: #{tpu_custom_call.1} parent=31 // pred_check
          %p270 = pneg %p61
        $region34: #{tpu_custom_call.1} parent=31 // pred_check_branch
          %272 = sbr.rel (%p270) target = $region36
        $region35: #{tpu_custom_call.1} parent=31 // pred_region
          %273 = dma.done %s266, 512
        $region36: #{tpu_custom_call.1} parent=31 // pred_fallthru
          _
        %s274 = sand.u32 %s48, 1
        %s275 = scalar_lea.sflag [#allocation3], %s274
        %s276 = sand.u32 %s48, 1
        %s277 = smul.addr %s276, 32
        %s278 = scalar_lea.vmem [#allocation2], %s277
        %p279 = pneg %p61
        %p280 = pneg %p58
        %p281 = pneg %p82
        %p282 = pneg %p79
        %p283 = pneg %p103
        %p284 = pneg %p100
        %p285 = pneg %p133
        %p286 = pneg %p130
        %s287 = sand.u32 %s120, 1
        %s288 = scalar_lea.sflag [#allocation4], %s287
        %s289 = sand.u32 %s120, 1
        %s290 = scalar_lea.vmem [#allocation5], %s289
        %p291 = pneg %p159
        %p292 = pneg %p156
        %p293 = scmp.lt.s32.totalorder %s28, 1
        %s294 = scalar_select %p293, %s28, 1
        %s295 = smul.addr %s294, 4
        %s296 = smul.addr %s295, 8
        %s297 = scalar_lea.vmem %s4, %s296
        %p298 = pneg %p185
        %p299 = pneg %p182
        %p300 = scmp.lt.s32.totalorder %s28, 1
        %s301 = scalar_select %p300, %s28, 1
        %s302 = smul.addr %s301, 8
        %s303 = scalar_lea.vmem %s5, %s302
        %p304 = pneg %p211
        %p305 = pneg %p208
        %p306 = scmp.lt.s32.totalorder %s28, 1
        %s307 = scalar_select %p306, %s28, 1
        %s308 = scalar_lea.vmem %s6, %s307
        %s309 = smul.u32 %s28, 2
        %s310 = sadd.s32 %s309, %s29
        %s311 = smul.u32 %s28, 2
        %s312 = sadd.s32 %s311, %s29
        %p313 = scmp.lt.s32.totalorder %s28, 1
        %s314 = scalar_select %p313, %s28, 1
        %s315 = smul.addr %s314, 4
        %s316 = smul.addr %s315, 8
        %s317 = scalar_lea.vmem %s4, %s316
        %p318 = scmp.lt.s32.totalorder %s28, 1
        %s319 = scalar_select %p318, %s28, 1
        %s320 = smul.addr %s319, 8
        %s321 = scalar_lea.vmem %s5, %s320
        %p322 = scmp.lt.s32.totalorder %s28, 1
        %s323 = scalar_select %p322, %s28, 1
        %s324 = scalar_lea.vmem %s6, %s323
        %p325 = scmp.eq.s32.totalorder %s29, 0
        // Predicated region
        $region37: #{tpu_custom_call.1} parent=31 // pred_check
          %p326 = pneg %p325
        $region38: #{tpu_custom_call.1} parent=31 // pred_check_branch
          %328 = sbr.rel (%p326) target = $region40
        $region39: #{tpu_custom_call.1} parent=31 // pred_region
          %vm329 = vcmask 64512
          %330 = vst.msk [vmem:[%s317] sm:$0xff] %vm329, 0.0
          %331 = vst.msk [vmem:[%s317 + $0x8] sm:$0xff] %vm329, 0.0
          %332 = vst.msk [vmem:[%s317 + $0x10] sm:$0xff] %vm329, 0.0
          %333 = vst.msk [vmem:[%s317 + $0x18] sm:$0xff] %vm329, 0.0
          %vm334 = vcmask 7168
          %335 = vst.msk [vmem:[%s321] sm:$0xff] %vm334, 0.0
          %vm336 = vcmask 0
          %337 = vst.msk [vmem:[%s324] sm:$0x1] %vm336, 0.0
        $region40: #{tpu_custom_call.1} parent=31 // pred_fallthru
          _
        %v338 = vld [vmem:[%s269] sm:$0xff]
        %v339 = vld [vmem:[%s269 + $0x8] sm:$0xff]
        %v340 = vld [vmem:[%s269 + $0x10] sm:$0xff]
        %v341 = vld [vmem:[%s269 + $0x18] sm:$0xff]
        %v342 = vld [vmem:[%s1] sm:$0xff]
        %v343 = vld [vmem:[%s2] sm:$0xff]
        %345 = vset.pattern.permute.xlu0 0
        %346 = vperm.xlu0 %345, %v343
        %v347 = vpop.permute.xlu0 %346
        %vm349 = vcmask 261120
        %v351 = vsel %vm349, %v342, 0
        %353 = vmatprep.subr.mxu0 0.0
        %v354 = vand.u32 %v338, 4294901760
        %355 = vmatpush1.msra.mxu0 %v354
        %356 = vmatprep.subr.mxu0 0.0
        %v357 = vand.u32 %v339, 4294901760
        %358 = vmatpush1.msra.mxu0 %v357
        %359 = vmatprep.subr.mxu0 0.0
        %v360 = vand.u32 %v340, 4294901760
        %361 = vmatpush1.msra.mxu0 %v360
        %362 = vmatprep.subr.mxu0 0.0
        %v363 = vand.u32 %v341, 4294901760
        %364 = vmatpush1.msra.mxu0 %v363
        %365 = vmatprep.subr.mxu0 0.0
        %366 = vmatpush1.msra.mxu0 0.0
        %367 = vmatprep.subr.mxu0 0.0
        %368 = vmatpush1.msra.mxu0 0.0
        %369 = vmatprep.subr.mxu0 0.0
        %370 = vmatpush1.msra.mxu0 0.0
        %371 = vmatprep.subr.mxu0 0.0
        %372 = vmatpush1.msra.mxu0 0.0
        %373 = vmatprep.subr.mxu0 0.0
        %374 = vmatpush1.msra.mxu0 0.0
        %375 = vmatprep.subr.mxu0 0.0
        %376 = vmatpush1.msra.mxu0 0.0
        %377 = vmatprep.subr.mxu0 0.0
        %378 = vmatpush1.msra.mxu0 0.0
        %379 = vmatprep.subr.mxu0 0.0
        %380 = vmatpush1.msra.mxu0 0.0
        %381 = vmatprep.subr.mxu0 0.0
        %382 = vmatpush1.msra.mxu0 0.0
        %383 = vmatprep.subr.mxu0 0.0
        %384 = vmatpush1.msra.mxu0 0.0
        %385 = vmatprep.subr.mxu0 0.0
        %386 = vmatpush1.msra.mxu0 0.0
        %387 = vmatprep.subr.mxu0 0.0
        %388 = vmatpush1.msra.mxu0 0.0
        %389 = vmatprep.subr.mxu0 0.0
        %390 = vmatpush1.msra.mxu0 0.0
        %391 = vmatprep.subr.mxu0 0.0
        %392 = vmatpush1.msra.mxu0 0.0
        %393 = vmatprep.subr.mxu0 0.0
        %394 = vmatpush1.msra.mxu0 0.0
        %395 = vmatprep.subr.mxu0 0.0
        %396 = vmatpush1.msra.mxu0 0.0
        %397 = vmatprep.subr.mxu0 0.0
        %398 = vmatpush1.msra.mxu0 0.0
        %399 = vmatprep.subr.mxu0 0.0
        %400 = vmatpush1.msra.mxu0 0.0
        %401 = vmatprep.subr.mxu0 0.0
        %402 = vmatpush1.msra.mxu0 0.0
        %403 = vmatprep.subr.mxu0 0.0
        %404 = vmatpush1.msra.mxu0 0.0
        %405 = vmatprep.subr.mxu0 0.0
        %406 = vmatpush1.msra.mxu0 0.0
        %407 = vmatprep.subr.mxu0 0.0
        %408 = vmatpush1.msra.mxu0 0.0
        %409 = vmatprep.subr.mxu0 0.0
        %410 = vmatpush1.msra.mxu0 0.0
        %411 = vmatprep.subr.mxu0 0.0
        %412 = vmatpush1.msra.mxu0 0.0
        %413 = vmatprep.subr.mxu0 0.0
        %414 = vmatpush1.msra.mxu0 0.0
        %415 = vmatprep.subr.mxu0 0.0
        %416 = vmatpush1.msra.mxu0 0.0
        %417 = vmatprep.subr.mxu0 0.0
        %418 = vmatpush1.msra.mxu0 0.0
        %419 = vmatprep.subr.mxu0 0.0
        %420 = vmatpush1.msra.mxu0 0.0
        %421 = vmatprep.mubr.f32.mxu0 0.0
        %v422 = vand.u32 %v351, 4294901760
        %v423 = vsub.f32 %v351, %v422
        %v424 = vand.u32 %v423, 4294901760
        %v425 = vsub.f32 %v423, %v424
        %v426 = vand.u32 %v425, 4294901760
        %427 = vmatmul.mubr.f32.gmra.mrb[0].mxu0 %v426
        %v428 = vpop.f32.mrb[0].mxu0
        %v429 = vadd.f32 %v347, %v428
        %v430 = vpop.f32.mrb[0].mxu0
        %431 = vdwg.mxu0
        %432 = vmatprep.subr.mxu0 0.0
        %v433 = vand.u32 %v338, 4294901760
        %v434 = vsub.f32 %v338, %v433
        %v435 = vand.u32 %v434, 4294901760
        %v436 = vsub.f32 %v434, %v435
        %v437 = vand.u32 %v436, 4294901760
        %438 = vmatpush1.msra.mxu0 %v437
        %439 = vmatprep.subr.mxu0 0.0
        %v440 = vand.u32 %v339, 4294901760
        %v441 = vsub.f32 %v339, %v440
        %v442 = vand.u32 %v441, 4294901760
        %v443 = vsub.f32 %v441, %v442
        %v444 = vand.u32 %v443, 4294901760
        %445 = vmatpush1.msra.mxu0 %v444
        %446 = vmatprep.subr.mxu0 0.0
        %v447 = vand.u32 %v340, 4294901760
        %v448 = vsub.f32 %v340, %v447
        %v449 = vand.u32 %v448, 4294901760
        %v450 = vsub.f32 %v448, %v449
        %v451 = vand.u32 %v450, 4294901760
        %452 = vmatpush1.msra.mxu0 %v451
        %453 = vmatprep.subr.mxu0 0.0
        %v454 = vand.u32 %v341, 4294901760
        %v455 = vsub.f32 %v341, %v454
        %v456 = vand.u32 %v455, 4294901760
        %v457 = vsub.f32 %v455, %v456
        %v458 = vand.u32 %v457, 4294901760
        %459 = vmatpush1.msra.mxu0 %v458
        %460 = vmatprep.subr.mxu0 0.0
        %461 = vmatpush1.msra.mxu0 0.0
        %462 = vmatprep.subr.mxu0 0.0
        %463 = vmatpush1.msra.mxu0 0.0
        %464 = vmatprep.subr.mxu0 0.0
        %465 = vmatpush1.msra.mxu0 0.0
        %466 = vmatprep.subr.mxu0 0.0
        %467 = vmatpush1.msra.mxu0 0.0
        %468 = vmatprep.subr.mxu0 0.0
        %469 = vmatpush1.msra.mxu0 0.0
        %470 = vmatprep.subr.mxu0 0.0
        %471 = vmatpush1.msra.mxu0 0.0
        %472 = vmatprep.subr.mxu0 0.0
        %473 = vmatpush1.msra.mxu0 0.0
        %474 = vmatprep.subr.mxu0 0.0
        %475 = vmatpush1.msra.mxu0 0.0
        %476 = vmatprep.subr.mxu0 0.0
        %477 = vmatpush1.msra.mxu0 0.0
        %478 = vmatprep.subr.mxu0 0.0
        %479 = vmatpush1.msra.mxu0 0.0
        %480 = vmatprep.subr.mxu0 0.0
        %481 = vmatpush1.msra.mxu0 0.0
        %482 = vmatprep.subr.mxu0 0.0
        %483 = vmatpush1.msra.mxu0 0.0
        %484 = vmatprep.subr.mxu0 0.0
        %485 = vmatpush1.msra.mxu0 0.0
        %486 = vmatprep.subr.mxu0 0.0
        %487 = vmatpush1.msra.mxu0 0.0
        %488 = vmatprep.subr.mxu0 0.0
        %489 = vmatpush1.msra.mxu0 0.0
        %490 = vmatprep.subr.mxu0 0.0
        %491 = vmatpush1.msra.mxu0 0.0
        %492 = vmatprep.subr.mxu0 0.0
        %493 = vmatpush1.msra.mxu0 0.0
        %494 = vmatprep.subr.mxu0 0.0
        %495 = vmatpush1.msra.mxu0 0.0
        %496 = vmatprep.subr.mxu0 0.0
        %497 = vmatpush1.msra.mxu0 0.0
        %498 = vmatprep.subr.mxu0 0.0
        %499 = vmatpush1.msra.mxu0 0.0
        %500 = vmatprep.subr.mxu0 0.0
        %501 = vmatpush1.msra.mxu0 0.0
        %502 = vmatprep.subr.mxu0 0.0
        %503 = vmatpush1.msra.mxu0 0.0
        %504 = vmatprep.subr.mxu0 0.0
        %505 = vmatpush1.msra.mxu0 0.0
        %506 = vmatprep.subr.mxu0 0.0
        %507 = vmatpush1.msra.mxu0 0.0
        %508 = vmatprep.subr.mxu0 0.0
        %509 = vmatpush1.msra.mxu0 0.0
        %510 = vmatprep.subr.mxu0 0.0
        %511 = vmatpush1.msra.mxu0 0.0
        %512 = vmatprep.subr.mxu0 0.0
        %513 = vmatpush1.msra.mxu0 0.0
        %514 = vmatprep.subr.mxu0 0.0
        %515 = vmatpush1.msra.mxu0 0.0
        %516 = vmatprep.mubr.f32.mxu0 0.0
        %v517 = vand.u32 %v351, 4294901760
        %518 = vmatmul.mubr.f32.gmra.mrb[0].mxu0 %v517
        %v519 = vpop.f32.mrb[0].mxu0
        %v520 = vadd.f32 %v429, %v519
        %v521 = vpop.f32.mrb[0].mxu0
        %522 = vdwg.mxu0
        %523 = vmatprep.subr.mxu0 0.0
        %v524 = vand.u32 %v338, 4294901760
        %v525 = vsub.f32 %v338, %v524
        %526 = vmatpush1.msra.mxu0 %v525
        %527 = vmatprep.subr.mxu0 0.0
        %v528 = vand.u32 %v339, 4294901760
        %v529 = vsub.f32 %v339, %v528
        %530 = vmatpush1.msra.mxu0 %v529
        %531 = vmatprep.subr.mxu0 0.0
        %v532 = vand.u32 %v340, 4294901760
        %v533 = vsub.f32 %v340, %v532
        %534 = vmatpush1.msra.mxu0 %v533
        %535 = vmatprep.subr.mxu0 0.0
        %v536 = vand.u32 %v341, 4294901760
        %v537 = vsub.f32 %v341, %v536
        %538 = vmatpush1.msra.mxu0 %v537
        %539 = vmatprep.subr.mxu0 0.0
        %540 = vmatpush1.msra.mxu0 0.0
        %541 = vmatprep.subr.mxu0 0.0
        %542 = vmatpush1.msra.mxu0 0.0
        %543 = vmatprep.subr.mxu0 0.0
        %544 = vmatpush1.msra.mxu0 0.0
        %545 = vmatprep.subr.mxu0 0.0
        %546 = vmatpush1.msra.mxu0 0.0
        %547 = vmatprep.subr.mxu0 0.0
        %548 = vmatpush1.msra.mxu0 0.0
        %549 = vmatprep.subr.mxu0 0.0
        %550 = vmatpush1.msra.mxu0 0.0
        %551 = vmatprep.subr.mxu0 0.0
        %552 = vmatpush1.msra.mxu0 0.0
        %553 = vmatprep.subr.mxu0 0.0
        %554 = vmatpush1.msra.mxu0 0.0
        %555 = vmatprep.subr.mxu0 0.0
        %556 = vmatpush1.msra.mxu0 0.0
        %557 = vmatprep.subr.mxu0 0.0
        %558 = vmatpush1.msra.mxu0 0.0
        %559 = vmatprep.subr.mxu0 0.0
        %560 = vmatpush1.msra.mxu0 0.0
        %561 = vmatprep.subr.mxu0 0.0
        %562 = vmatpush1.msra.mxu0 0.0
        %563 = vmatprep.subr.mxu0 0.0
        %564 = vmatpush1.msra.mxu0 0.0
        %565 = vmatprep.subr.mxu0 0.0
        %566 = vmatpush1.msra.mxu0 0.0
        %567 = vmatprep.subr.mxu0 0.0
        %568 = vmatpush1.msra.mxu0 0.0
        %569 = vmatprep.subr.mxu0 0.0
        %570 = vmatpush1.msra.mxu0 0.0
        %571 = vmatprep.subr.mxu0 0.0
        %572 = vmatpush1.msra.mxu0 0.0
        %573 = vmatprep.subr.mxu0 0.0
        %574 = vmatpush1.msra.mxu0 0.0
        %575 = vmatprep.subr.mxu0 0.0
        %576 = vmatpush1.msra.mxu0 0.0
        %577 = vmatprep.subr.mxu0 0.0
        %578 = vmatpush1.msra.mxu0 0.0
        %579 = vmatprep.subr.mxu0 0.0
        %580 = vmatpush1.msra.mxu0 0.0
        %581 = vmatprep.subr.mxu0 0.0
        %582 = vmatpush1.msra.mxu0 0.0
        %583 = vmatprep.subr.mxu0 0.0
        %584 = vmatpush1.msra.mxu0 0.0
        %585 = vmatprep.subr.mxu0 0.0
        %586 = vmatpush1.msra.mxu0 0.0
        %587 = vmatprep.subr.mxu0 0.0
        %588 = vmatpush1.msra.mxu0 0.0
        %589 = vmatprep.subr.mxu0 0.0
        %590 = vmatpush1.msra.mxu0 0.0
        %591 = vmatprep.subr.mxu0 0.0
        %592 = vmatpush1.msra.mxu0 0.0
        %593 = vmatprep.subr.mxu0 0.0
        %594 = vmatpush1.msra.mxu0 0.0
        %595 = vmatprep.mubr.f32.mxu0 0.0
        %v596 = vand.u32 %v351, 4294901760
        %v597 = vsub.f32 %v351, %v596
        %598 = vmatmul.mubr.f32.gmra.mrb[0].mxu0 %v597
        %v599 = vpop.f32.mrb[0].mxu0
        %v600 = vadd.f32 %v520, %v599
        %v601 = vpop.f32.mrb[0].mxu0
        %602 = vdwg.mxu0
        %603 = vmatprep.subr.mxu0 0.0
        %v604 = vand.u32 %v338, 4294901760
        %605 = vmatpush1.msra.mxu0 %v604
        %606 = vmatprep.subr.mxu0 0.0
        %v607 = vand.u32 %v339, 4294901760
        %608 = vmatpush1.msra.mxu0 %v607
        %609 = vmatprep.subr.mxu0 0.0
        %v610 = vand.u32 %v340, 4294901760
        %611 = vmatpush1.msra.mxu0 %v610
        %612 = vmatprep.subr.mxu0 0.0
        %v613 = vand.u32 %v341, 4294901760
        %614 = vmatpush1.msra.mxu0 %v613
        %615 = vmatprep.subr.mxu0 0.0
        %616 = vmatpush1.msra.mxu0 0.0
        %617 = vmatprep.subr.mxu0 0.0
        %618 = vmatpush1.msra.mxu0 0.0
        %619 = vmatprep.subr.mxu0 0.0
        %620 = vmatpush1.msra.mxu0 0.0
        %621 = vmatprep.subr.mxu0 0.0
        %622 = vmatpush1.msra.mxu0 0.0
        %623 = vmatprep.subr.mxu0 0.0
        %624 = vmatpush1.msra.mxu0 0.0
        %625 = vmatprep.subr.mxu0 0.0
        %626 = vmatpush1.msra.mxu0 0.0
        %627 = vmatprep.subr.mxu0 0.0
        %628 = vmatpush1.msra.mxu0 0.0
        %629 = vmatprep.subr.mxu0 0.0
        %630 = vmatpush1.msra.mxu0 0.0
        %631 = vmatprep.subr.mxu0 0.0
        %632 = vmatpush1.msra.mxu0 0.0
        %633 = vmatprep.subr.mxu0 0.0
        %634 = vmatpush1.msra.mxu0 0.0
        %635 = vmatprep.subr.mxu0 0.0
        %636 = vmatpush1.msra.mxu0 0.0
        %637 = vmatprep.subr.mxu0 0.0
        %638 = vmatpush1.msra.mxu0 0.0
        %639 = vmatprep.subr.mxu0 0.0
        %640 = vmatpush1.msra.mxu0 0.0
        %641 = vmatprep.subr.mxu0 0.0
        %642 = vmatpush1.msra.mxu0 0.0
        %643 = vmatprep.subr.mxu0 0.0
        %644 = vmatpush1.msra.mxu0 0.0
        %645 = vmatprep.subr.mxu0 0.0
        %646 = vmatpush1.msra.mxu0 0.0
        %647 = vmatprep.subr.mxu0 0.0
        %648 = vmatpush1.msra.mxu0 0.0
        %649 = vmatprep.subr.mxu0 0.0
        %650 = vmatpush1.msra.mxu0 0.0
        %651 = vmatprep.subr.mxu0 0.0
        %652 = vmatpush1.msra.mxu0 0.0
        %653 = vmatprep.subr.mxu0 0.0
        %654 = vmatpush1.msra.mxu0 0.0
        %655 = vmatprep.subr.mxu0 0.0
        %656 = vmatpush1.msra.mxu0 0.0
        %657 = vmatprep.subr.mxu0 0.0
        %658 = vmatpush1.msra.mxu0 0.0
        %659 = vmatprep.subr.mxu0 0.0
        %660 = vmatpush1.msra.mxu0 0.0
        %661 = vmatprep.subr.mxu0 0.0
        %662 = vmatpush1.msra.mxu0 0.0
        %663 = vmatprep.subr.mxu0 0.0
        %664 = vmatpush1.msra.mxu0 0.0
        %665 = vmatprep.subr.mxu0 0.0
        %666 = vmatpush1.msra.mxu0 0.0
        %667 = vmatprep.subr.mxu0 0.0
        %668 = vmatpush1.msra.mxu0 0.0
        %669 = vmatprep.subr.mxu0 0.0
        %670 = vmatpush1.msra.mxu0 0.0
        %671 = vmatprep.mubr.f32.mxu0 0.0
        %v672 = vand.u32 %v351, 4294901760
        %v673 = vsub.f32 %v351, %v672
        %v674 = vand.u32 %v673, 4294901760
        %675 = vmatmul.mubr.f32.gmra.mrb[0].mxu0 %v674
        %v676 = vpop.f32.mrb[0].mxu0
        %v677 = vadd.f32 %v600, %v676
        %v678 = vpop.f32.mrb[0].mxu0
        %679 = vdwg.mxu0
        %680 = vmatprep.subr.mxu0 0.0
        %v681 = vand.u32 %v338, 4294901760
        %v682 = vsub.f32 %v338, %v681
        %v683 = vand.u32 %v682, 4294901760
        %684 = vmatpush1.msra.mxu0 %v683
        %685 = vmatprep.subr.mxu0 0.0
        %v686 = vand.u32 %v339, 4294901760
        %v687 = vsub.f32 %v339, %v686
        %v688 = vand.u32 %v687, 4294901760
        %689 = vmatpush1.msra.mxu0 %v688
        %690 = vmatprep.subr.mxu0 0.0
        %v691 = vand.u32 %v340, 4294901760
        %v692 = vsub.f32 %v340, %v691
        %v693 = vand.u32 %v692, 4294901760
        %694 = vmatpush1.msra.mxu0 %v693
        %695 = vmatprep.subr.mxu0 0.0
        %v696 = vand.u32 %v341, 4294901760
        %v697 = vsub.f32 %v341, %v696
        %v698 = vand.u32 %v697, 4294901760
        %699 = vmatpush1.msra.mxu0 %v698
        %700 = vmatprep.subr.mxu0 0.0
        %701 = vmatpush1.msra.mxu0 0.0
        %702 = vmatprep.subr.mxu0 0.0
        %703 = vmatpush1.msra.mxu0 0.0
        %704 = vmatprep.subr.mxu0 0.0
        %705 = vmatpush1.msra.mxu0 0.0
        %706 = vmatprep.subr.mxu0 0.0
        %707 = vmatpush1.msra.mxu0 0.0
        %708 = vmatprep.subr.mxu0 0.0
        %709 = vmatpush1.msra.mxu0 0.0
        %710 = vmatprep.subr.mxu0 0.0
        %711 = vmatpush1.msra.mxu0 0.0
        %712 = vmatprep.subr.mxu0 0.0
        %713 = vmatpush1.msra.mxu0 0.0
        %714 = vmatprep.subr.mxu0 0.0
        %715 = vmatpush1.msra.mxu0 0.0
        %716 = vmatprep.subr.mxu0 0.0
        %717 = vmatpush1.msra.mxu0 0.0
        %718 = vmatprep.subr.mxu0 0.0
        %719 = vmatpush1.msra.mxu0 0.0
        %720 = vmatprep.subr.mxu0 0.0
        %721 = vmatpush1.msra.mxu0 0.0
        %722 = vmatprep.subr.mxu0 0.0
        %723 = vmatpush1.msra.mxu0 0.0
        %724 = vmatprep.subr.mxu0 0.0
        %725 = vmatpush1.msra.mxu0 0.0
        %726 = vmatprep.subr.mxu0 0.0
        %727 = vmatpush1.msra.mxu0 0.0
        %728 = vmatprep.subr.mxu0 0.0
        %729 = vmatpush1.msra.mxu0 0.0
        %730 = vmatprep.subr.mxu0 0.0
        %731 = vmatpush1.msra.mxu0 0.0
        %732 = vmatprep.subr.mxu0 0.0
        %733 = vmatpush1.msra.mxu0 0.0
        %734 = vmatprep.subr.mxu0 0.0
        %735 = vmatpush1.msra.mxu0 0.0
        %736 = vmatprep.subr.mxu0 0.0
        %737 = vmatpush1.msra.mxu0 0.0
        %738 = vmatprep.subr.mxu0 0.0
        %739 = vmatpush1.msra.mxu0 0.0
        %740 = vmatprep.subr.mxu0 0.0
        %741 = vmatpush1.msra.mxu0 0.0
        %742 = vmatprep.subr.mxu0 0.0
        %743 = vmatpush1.msra.mxu0 0.0
        %744 = vmatprep.subr.mxu0 0.0
        %745 = vmatpush1.msra.mxu0 0.0
        %746 = vmatprep.subr.mxu0 0.0
        %747 = vmatpush1.msra.mxu0 0.0
        %748 = vmatprep.subr.mxu0 0.0
        %749 = vmatpush1.msra.mxu0 0.0
        %750 = vmatprep.subr.mxu0 0.0
        %751 = vmatpush1.msra.mxu0 0.0
        %752 = vmatprep.subr.mxu0 0.0
        %753 = vmatpush1.msra.mxu0 0.0
        %754 = vmatprep.subr.mxu0 0.0
        %755 = vmatpush1.msra.mxu0 0.0
        %756 = vmatprep.mubr.f32.mxu0 0.0
        %v757 = vand.u32 %v351, 4294901760
        %758 = vmatmul.mubr.f32.gmra.mrb[0].mxu0 %v757
        %v759 = vpop.f32.mrb[0].mxu0
        %v760 = vadd.f32 %v677, %v759
        %v761 = vpop.f32.mrb[0].mxu0
        %762 = vdwg.mxu0
        %763 = vmatprep.subr.mxu0 0.0
        %v764 = vand.u32 %v338, 4294901760
        %765 = vmatpush1.msra.mxu0 %v764
        %766 = vmatprep.subr.mxu0 0.0
        %v767 = vand.u32 %v339, 4294901760
        %768 = vmatpush1.msra.mxu0 %v767
        %769 = vmatprep.subr.mxu0 0.0
        %v770 = vand.u32 %v340, 4294901760
        %771 = vmatpush1.msra.mxu0 %v770
        %772 = vmatprep.subr.mxu0 0.0
        %v773 = vand.u32 %v341, 4294901760
        %774 = vmatpush1.msra.mxu0 %v773
        %775 = vmatprep.subr.mxu0 0.0
        %776 = vmatpush1.msra.mxu0 0.0
        %777 = vmatprep.subr.mxu0 0.0
        %778 = vmatpush1.msra.mxu0 0.0
        %779 = vmatprep.subr.mxu0 0.0
        %780 = vmatpush1.msra.mxu0 0.0
        %781 = vmatprep.subr.mxu0 0.0
        %782 = vmatpush1.msra.mxu0 0.0
        %783 = vmatprep.subr.mxu0 0.0
        %784 = vmatpush1.msra.mxu0 0.0
        %785 = vmatprep.subr.mxu0 0.0
        %786 = vmatpush1.msra.mxu0 0.0
        %787 = vmatprep.subr.mxu0 0.0
        %788 = vmatpush1.msra.mxu0 0.0
        %789 = vmatprep.subr.mxu0 0.0
        %790 = vmatpush1.msra.mxu0 0.0
        %791 = vmatprep.subr.mxu0 0.0
        %792 = vmatpush1.msra.mxu0 0.0
        %793 = vmatprep.subr.mxu0 0.0
        %794 = vmatpush1.msra.mxu0 0.0
        %795 = vmatprep.subr.mxu0 0.0
        %796 = vmatpush1.msra.mxu0 0.0
        %797 = vmatprep.subr.mxu0 0.0
        %798 = vmatpush1.msra.mxu0 0.0
        %799 = vmatprep.subr.mxu0 0.0
        %800 = vmatpush1.msra.mxu0 0.0
        %801 = vmatprep.subr.mxu0 0.0
        %802 = vmatpush1.msra.mxu0 0.0
        %803 = vmatprep.subr.mxu0 0.0
        %804 = vmatpush1.msra.mxu0 0.0
        %805 = vmatprep.subr.mxu0 0.0
        %806 = vmatpush1.msra.mxu0 0.0
        %807 = vmatprep.subr.mxu0 0.0
        %808 = vmatpush1.msra.mxu0 0.0
        %809 = vmatprep.subr.mxu0 0.0
        %810 = vmatpush1.msra.mxu0 0.0
        %811 = vmatprep.subr.mxu0 0.0
        %812 = vmatpush1.msra.mxu0 0.0
        %813 = vmatprep.subr.mxu0 0.0
        %814 = vmatpush1.msra.mxu0 0.0
        %815 = vmatprep.subr.mxu0 0.0
        %816 = vmatpush1.msra.mxu0 0.0
        %817 = vmatprep.subr.mxu0 0.0
        %818 = vmatpush1.msra.mxu0 0.0
        %819 = vmatprep.subr.mxu0 0.0
        %820 = vmatpush1.msra.mxu0 0.0
        %821 = vmatprep.subr.mxu0 0.0
        %822 = vmatpush1.msra.mxu0 0.0
        %823 = vmatprep.subr.mxu0 0.0
        %824 = vmatpush1.msra.mxu0 0.0
        %825 = vmatprep.subr.mxu0 0.0
        %826 = vmatpush1.msra.mxu0 0.0
        %827 = vmatprep.subr.mxu0 0.0
        %828 = vmatpush1.msra.mxu0 0.0
        %829 = vmatprep.subr.mxu0 0.0
        %830 = vmatpush1.msra.mxu0 0.0
        %831 = vmatprep.mubr.f32.mxu0 0.0
        %v832 = vand.u32 %v351, 4294901760
        %833 = vmatmul.mubr.f32.gmra.mrb[0].mxu0 %v832
        %v834 = vpop.f32.mrb[0].mxu0
        %v835 = vadd.f32 %v760, %v834
        %v836 = vpop.f32.mrb[0].mxu0
        %837 = vdwg.mxu0
        %v838 = vrot.slane %v835, 4
        %v839 = vmin.f32 %v835, %v838
        %v840 = vrot.slane %v839, 2
        %v841 = vmin.f32 %v839, %v840
        %v842 = vrot.slane %v841, 1
        %v843 = vmin.f32 %v841, %v842
        %v844 = vlaneseq
        %v845 = vshrl.u32 %v844, 7
        %vm846 = vcmp.eq.f32.partialorder %v835, %v843
        %v847 = vcvt.s32.f32 %v845
        %v848 = vsel %vm846, %v847, 8.0
        %v849 = vrot.slane %v848, 4
        %v850 = vmin.f32 %v848, %v849
        %v851 = vrot.slane %v850, 2
        %v852 = vmin.f32 %v850, %v851
        %v853 = vrot.slane %v852, 1
        %v854 = vmin.f32 %v852, %v853
        %v855 = vcvt.f32.s32.to.zero.pseudo %v854
        %856 = vst [vmem:[%s290] sm:$0x1] %v855
        %vm857 = vcmp.eq.s32.totalorder %v845, %v855
        %v858 = vsel %vm857, 1, 0
        %v859 = vcvt.s32.f32 %v858
        %v860 = vld [vmem:[%s321] sm:$0xff]
        %861 = vadd.xlane.f32.xlu0 %v859
        %v862 = vpop.xlane.xlu0 %861
        %v863 = vadd.f32 %v860, %v862
        %vm864 = vcmask 7168
        %865 = vst.msk [vmem:[%s321] sm:$0xff] %vm864, %v863
        %vm866 = vcmp.eq.s32.totalorder %v855, 0
        %v867 = vsel %vm866, 1, 0
        %vm868 = vcmp.eq.s32.totalorder %v867, 1
        %v869 = vsel %vm868, %v338, 0.0
        %v870 = vsel %vm868, %v339, 0.0
        %v871 = vsel %vm868, %v340, 0.0
        %v872 = vsel %vm868, %v341, 0.0
        %873 = vadd.xlane.f32.xlu0 %v869
        %v874 = vpop.xlane.xlu0 %873
        %875 = vadd.xlane.f32.xlu0 %v870
        %v876 = vpop.xlane.xlu0 %875
        %877 = vadd.xlane.f32.xlu0 %v871
        %v878 = vpop.xlane.xlu0 %877
        %879 = vadd.xlane.f32.xlu0 %v872
        %v880 = vpop.xlane.xlu0 %879
        %vm881 = vcmp.eq.s32.totalorder %v855, 1
        %v882 = vsel %vm881, 1, 0
        %vm883 = vcmp.eq.s32.totalorder %v882, 1
        %v884 = vsel %vm883, %v338, 0.0
        %v885 = vsel %vm883, %v339, 0.0
        %v886 = vsel %vm883, %v340, 0.0
        %v887 = vsel %vm883, %v341, 0.0
        %888 = vadd.xlane.f32.xlu0 %v884
        %v889 = vpop.xlane.xlu0 %888
        %890 = vadd.xlane.f32.xlu0 %v885
        %v891 = vpop.xlane.xlu0 %890
        %892 = vadd.xlane.f32.xlu0 %v886
        %v893 = vpop.xlane.xlu0 %892
        %894 = vadd.xlane.f32.xlu0 %v887
        %v895 = vpop.xlane.xlu0 %894
        %vm896 = vcmp.eq.s32.totalorder %v855, 2
        %v897 = vsel %vm896, 1, 0
        %vm898 = vcmp.eq.s32.totalorder %v897, 1
        %v899 = vsel %vm898, %v338, 0.0
        %v900 = vsel %vm898, %v339, 0.0
        %v901 = vsel %vm898, %v340, 0.0
        %v902 = vsel %vm898, %v341, 0.0
        %903 = vadd.xlane.f32.xlu0 %v899
        %v904 = vpop.xlane.xlu0 %903
        %905 = vadd.xlane.f32.xlu0 %v900
        %v906 = vpop.xlane.xlu0 %905
        %907 = vadd.xlane.f32.xlu0 %v901
        %v908 = vpop.xlane.xlu0 %907
        %909 = vadd.xlane.f32.xlu0 %v902
        %v910 = vpop.xlane.xlu0 %909
        %vm911 = vcmp.eq.s32.totalorder %v855, 3
        %v912 = vsel %vm911, 1, 0
        %vm913 = vcmp.eq.s32.totalorder %v912, 1
        %v914 = vsel %vm913, %v338, 0.0
        %v915 = vsel %vm913, %v339, 0.0
        %v916 = vsel %vm913, %v340, 0.0
        %v917 = vsel %vm913, %v341, 0.0
        %918 = vadd.xlane.f32.xlu0 %v914
        %v919 = vpop.xlane.xlu0 %918
        %920 = vadd.xlane.f32.xlu0 %v915
        %v921 = vpop.xlane.xlu0 %920
        %922 = vadd.xlane.f32.xlu0 %v916
        %v923 = vpop.xlane.xlu0 %922
        %924 = vadd.xlane.f32.xlu0 %v917
        %v925 = vpop.xlane.xlu0 %924
        %vm926 = vcmp.eq.s32.totalorder %v855, 4
        %v927 = vsel %vm926, 1, 0
        %vm928 = vcmp.eq.s32.totalorder %v927, 1
        %v929 = vsel %vm928, %v338, 0.0
        %v930 = vsel %vm928, %v339, 0.0
        %v931 = vsel %vm928, %v340, 0.0
        %v932 = vsel %vm928, %v341, 0.0
        %933 = vadd.xlane.f32.xlu0 %v929
        %v934 = vpop.xlane.xlu0 %933
        %935 = vadd.xlane.f32.xlu0 %v930
        %v936 = vpop.xlane.xlu0 %935
        %937 = vadd.xlane.f32.xlu0 %v931
        %v938 = vpop.xlane.xlu0 %937
        %939 = vadd.xlane.f32.xlu0 %v932
        %v940 = vpop.xlane.xlu0 %939
        %vm941 = vcmp.eq.s32.totalorder %v855, 5
        %v942 = vsel %vm941, 1, 0
        %vm943 = vcmp.eq.s32.totalorder %v942, 1
        %v944 = vsel %vm943, %v338, 0.0
        %v945 = vsel %vm943, %v339, 0.0
        %v946 = vsel %vm943, %v340, 0.0
        %v947 = vsel %vm943, %v341, 0.0
        %948 = vadd.xlane.f32.xlu0 %v944
        %v949 = vpop.xlane.xlu0 %948
        %950 = vadd.xlane.f32.xlu0 %v945
        %v951 = vpop.xlane.xlu0 %950
        %952 = vadd.xlane.f32.xlu0 %v946
        %v953 = vpop.xlane.xlu0 %952
        %954 = vadd.xlane.f32.xlu0 %v947
        %v955 = vpop.xlane.xlu0 %954
        %vm956 = vcmp.eq.s32.totalorder %v855, 6
        %v957 = vsel %vm956, 1, 0
        %vm958 = vcmp.eq.s32.totalorder %v957, 1
        %v959 = vsel %vm958, %v338, 0.0
        %v960 = vsel %vm958, %v339, 0.0
        %v961 = vsel %vm958, %v340, 0.0
        %v962 = vsel %vm958, %v341, 0.0
        %963 = vadd.xlane.f32.xlu0 %v959
        %v964 = vpop.xlane.xlu0 %963
        %965 = vadd.xlane.f32.xlu0 %v960
        %v966 = vpop.xlane.xlu0 %965
        %967 = vadd.xlane.f32.xlu0 %v961
        %v968 = vpop.xlane.xlu0 %967
        %969 = vadd.xlane.f32.xlu0 %v962
        %v970 = vpop.xlane.xlu0 %969
        %vm971 = vcmp.eq.s32.totalorder %v855, 7
        %v972 = vsel %vm971, 1, 0
        %vm973 = vcmp.eq.s32.totalorder %v972, 1
        %v974 = vsel %vm973, %v338, 0.0
        %v975 = vsel %vm973, %v339, 0.0
        %v976 = vsel %vm973, %v340, 0.0
        %v977 = vsel %vm973, %v341, 0.0
        %978 = vadd.xlane.f32.xlu0 %v974
        %v979 = vpop.xlane.xlu0 %978
        %980 = vadd.xlane.f32.xlu0 %v975
        %v981 = vpop.xlane.xlu0 %980
        %982 = vadd.xlane.f32.xlu0 %v976
        %v983 = vpop.xlane.xlu0 %982
        %984 = vadd.xlane.f32.xlu0 %v977
        %v985 = vpop.xlane.xlu0 %984
        %v986 = vld [vmem:[%s317] sm:$0xff]
        %v987 = vld [vmem:[%s317 + $0x8] sm:$0xff]
        %v988 = vld [vmem:[%s317 + $0x10] sm:$0xff]
        %v989 = vld [vmem:[%s317 + $0x18] sm:$0xff]
        %v990 = vsel %vm864, %v874, %v889
        %v991 = vsel %vm864, %v876, %v891
        %v992 = vsel %vm864, %v878, %v893
        %v993 = vsel %vm864, %v880, %v895
        %vm994 = vcmask 15360
        %v995 = vsel %vm994, %v990, %v904
        %v996 = vsel %vm994, %v991, %v906
        %v997 = vsel %vm994, %v992, %v908
        %v998 = vsel %vm994, %v993, %v910
        %vm999 = vcmask 23552
        %v1000 = vsel %vm999, %v995, %v919
        %v1001 = vsel %vm999, %v996, %v921
        %v1002 = vsel %vm999, %v997, %v923
        %v1003 = vsel %vm999, %v998, %v925
        %vm1004 = vcmask 31744
        %v1005 = vsel %vm1004, %v1000, %v934
        %v1006 = vsel %vm1004, %v1001, %v936
        %v1007 = vsel %vm1004, %v1002, %v938
        %v1008 = vsel %vm1004, %v1003, %v940
        %vm1009 = vcmask 39936
        %v1010 = vsel %vm1009, %v1005, %v949
        %v1011 = vsel %vm1009, %v1006, %v951
        %v1012 = vsel %vm1009, %v1007, %v953
        %v1013 = vsel %vm1009, %v1008, %v955
        %vm1014 = vcmask 48128
        %v1015 = vsel %vm1014, %v1010, %v964
        %v1016 = vsel %vm1014, %v1011, %v966
        %v1017 = vsel %vm1014, %v1012, %v968
        %v1018 = vsel %vm1014, %v1013, %v970
        %vm1019 = vcmask 56320
        %v1020 = vsel %vm1019, %v1015, %v979
        %v1021 = vsel %vm1019, %v1016, %v981
        %v1022 = vsel %vm1019, %v1017, %v983
        %v1023 = vsel %vm1019, %v1018, %v985
        %v1024 = vadd.f32 %v986, %v1020
        %v1025 = vadd.f32 %v987, %v1021
        %v1026 = vadd.f32 %v988, %v1022
        %v1027 = vadd.f32 %v989, %v1023
        %vm1028 = vcmask 64512
        %1029 = vst.msk [vmem:[%s317] sm:$0xff] %vm1028, %v1024
        %1030 = vst.msk [vmem:[%s317 + $0x8] sm:$0xff] %vm1028, %v1025
        %1031 = vst.msk [vmem:[%s317 + $0x10] sm:$0xff] %vm1028, %v1026
        %1032 = vst.msk [vmem:[%s317 + $0x18] sm:$0xff] %vm1028, %v1027
        %v1033 = vld [vmem:[%s324] sm:$0x1]
        %v1034 = vmul.f32 %v338, %v338
        %v1035 = vmul.f32 %v339, %v339
        %v1036 = vmul.f32 %v340, %v340
        %v1037 = vmul.f32 %v341, %v341
        %v1038 = vadd.f32 %v1034, %v1035
        %v1039 = vadd.f32 %v1038, %v1036
        %v1040 = vadd.f32 %v1039, %v1037
        %1041 = vadd.xlane.f32.xlu0 %v1040
        %v1042 = vpop.xlane.xlu0 %1041
        %v1043 = vrot.slane %v1042, 4
        %v1044 = vadd.f32 %v1042, %v1043
        %v1045 = vrot.slane %v1044, 2
        %v1046 = vadd.f32 %v1044, %v1045
        %v1047 = vrot.slane %v1046, 1
        %v1048 = vadd.f32 %v1046, %v1047
        %s1049 = vtos %v1048
        %vm1050 = vcmask 1040384
        %v1051 = vsel %vm1050, %v843, 0.0
        %1052 = vadd.xlane.f32.xlu0 %v1051
        %v1053 = vpop.xlane.xlu0 %1052
        %v1054 = vrot.slane %v1053, 4
        %v1055 = vadd.f32 %v1053, %v1054
        %v1056 = vrot.slane %v1055, 2
        %v1057 = vadd.f32 %v1055, %v1056
        %v1058 = vrot.slane %v1057, 1
        %v1059 = vadd.f32 %v1057, %v1058
        %s1060 = vtos %v1059
        %s1061 = sadd.f32 %s1049, %s1060
        %v1062 = vstv %s1061
        %v1063 = vadd.f32 %v1033, %v1062
        %vm1064 = vcmask 0
        %1065 = vst.msk [vmem:[%s324] sm:$0x1] %vm1064, %v1063
        %s1066 = sand.u32 %s120, 1
        %s1067 = scalar_lea.sflag [#allocation4], %s1066
        %s1068 = sand.u32 %s120, 1
        %s1069 = scalar_lea.vmem [#allocation5], %s1068
        %p1070 = scmp.lt.s32.totalorder %s28, 1
        %s1071 = scalar_select %p1070, %s28, 1
        %s1072 = smul.addr %s1071, 4
        %s1073 = smul.addr %s1072, 8
        %s1074 = scalar_lea.vmem %s4, %s1073
        %p1075 = scmp.lt.s32.totalorder %s28, 1
        %s1076 = scalar_select %p1075, %s28, 1
        %s1077 = smul.addr %s1076, 8
        %s1078 = scalar_lea.vmem %s5, %s1077
        %p1079 = scmp.lt.s32.totalorder %s28, 1
        %s1080 = scalar_select %p1079, %s28, 1
        %s1081 = scalar_lea.vmem %s6, %s1080
        // Predicated region
        $region41: #{tpu_custom_call.1} parent=31 // pred_check
          %p1082 = pneg %p130
        $region42: #{tpu_custom_call.1} parent=31 // pred_check_branch
          %1084 = sbr.rel (%p1082) target = $region44
        $region43: #{tpu_custom_call.1} parent=31 // pred_region
          %s1085 = smul.u32 %s28, 2
          %s1086 = sadd.s32 %s1085, %s29
          %s1088 = ssub.s32 16, 16
          %1089 = vsyncadd %s1067, %s1088
          %s1090 = smul.addr %s1086, 16
          %s1091 = scalar_lea.hbm %s3, %s1090
          %s1093 = sshll.u32 %s1069, 4
          %s1094 = int_to_ptr.vmem [resolvable:$true] %s1093
          %1096 = dma.vmem_to_hbm [thread:$0]  %s1094, 16, %s1091, %s1067
        $region44: #{tpu_custom_call.1} parent=31 // pred_fallthru
          _
        // Predicated region
        $region45: #{tpu_custom_call.1} parent=31 // pred_check
          %p1097 = pneg %p156
        $region46: #{tpu_custom_call.1} parent=31 // pred_check_branch
          %1099 = sbr.rel (%p1097) target = $region48
        $region47: #{tpu_custom_call.1} parent=31 // pred_region
          _
        $region48: #{tpu_custom_call.1} parent=31 // pred_fallthru
          _
        // Predicated region
        $region49: #{tpu_custom_call.1} parent=31 // pred_check
          %p1100 = pneg %p182
        $region50: #{tpu_custom_call.1} parent=31 // pred_check_branch
          %1102 = sbr.rel (%p1100) target = $region52
        $region51: #{tpu_custom_call.1} parent=31 // pred_region
          _
        $region52: #{tpu_custom_call.1} parent=31 // pred_fallthru
          _
        // Predicated region
        $region53: #{tpu_custom_call.1} parent=31 // pred_check
          %p1103 = pneg %p208
        $region54: #{tpu_custom_call.1} parent=31 // pred_check_branch
          %1105 = sbr.rel (%p1103) target = $region56
        $region55: #{tpu_custom_call.1} parent=31 // pred_region
          _
        $region56: #{tpu_custom_call.1} parent=31 // pred_fallthru
          _
      $region32: #{tpu_custom_call.1} parent=5 // pred_fallthru
        _
      %p1106 = scmp.le.s32.totalorder 2, %s19
      // Predicated region
      $region57: #{tpu_custom_call.1} parent=5 // pred_check
        %p1107 = pneg %p1106
      $region58: #{tpu_custom_call.1} parent=5 // pred_check_branch
        %1109 = sbr.rel (%p1107) target = $region60
      $region59: #{tpu_custom_call.1} parent=5 // pred_region
        %s1110 = ssub.s32 %s19, 2
        // Predicated region
        $region61: #{tpu_custom_call.1} parent=59 // pred_check
          %p1111 = pneg %p136
        $region62: #{tpu_custom_call.1} parent=59 // pred_check_branch
          %1113 = sbr.rel (%p1111) target = $region64
        $region63: #{tpu_custom_call.1} parent=59 // pred_region
          %s1114 = sand.u32 %s121, 1
          %s1115 = scalar_lea.sflag [#allocation4], %s1114
          %s1116 = sand.u32 %s121, 1
          %s1117 = scalar_lea.vmem [#allocation5], %s1116
          %1118 = dma.done %s1115, 16
        $region64: #{tpu_custom_call.1} parent=59 // pred_fallthru
          _
        // Predicated region
        $region65: #{tpu_custom_call.1} parent=59 // pred_check
          %p1119 = pneg %p162
        $region66: #{tpu_custom_call.1} parent=59 // pred_check_branch
          %1121 = sbr.rel (%p1119) target = $region68
        $region67: #{tpu_custom_call.1} parent=59 // pred_region
          %p1122 = scmp.lt.s32.totalorder %s30, 1
          %s1123 = scalar_select %p1122, %s30, 1
          %s1124 = smul.addr %s1123, 4
          %s1125 = smul.addr %s1124, 8
          %s1126 = scalar_lea.vmem %s4, %s1125
        $region68: #{tpu_custom_call.1} parent=59 // pred_fallthru
          _
        // Predicated region
        $region69: #{tpu_custom_call.1} parent=59 // pred_check
          %p1127 = pneg %p188
        $region70: #{tpu_custom_call.1} parent=59 // pred_check_branch
          %1129 = sbr.rel (%p1127) target = $region72
        $region71: #{tpu_custom_call.1} parent=59 // pred_region
          %p1130 = scmp.lt.s32.totalorder %s30, 1
          %s1131 = scalar_select %p1130, %s30, 1
          %s1132 = smul.addr %s1131, 8
          %s1133 = scalar_lea.vmem %s5, %s1132
        $region72: #{tpu_custom_call.1} parent=59 // pred_fallthru
          _
        // Predicated region
        $region73: #{tpu_custom_call.1} parent=59 // pred_check
          %p1134 = pneg %p214
        $region74: #{tpu_custom_call.1} parent=59 // pred_check_branch
          %1136 = sbr.rel (%p1134) target = $region76
        $region75: #{tpu_custom_call.1} parent=59 // pred_region
          %p1137 = scmp.lt.s32.totalorder %s30, 1
          %s1138 = scalar_select %p1137, %s30, 1
          %s1139 = scalar_lea.vmem %s6, %s1138
        $region76: #{tpu_custom_call.1} parent=59 // pred_fallthru
          _
      $region60: #{tpu_custom_call.1} parent=5 // pred_fallthru
        _
    $region6: #{tpu_custom_call.1} parent=1 // loop_footer
      %s23 = sadd.s32 1, %s19
    $region7: #{tpu_custom_call.1} parent=1 // loop_footer_branch
      %18 = sbr.rel target = $region3
    $region8: #{tpu_custom_call.1} parent=1 // loop_exit
      _
    %1140 = vsyncpa [#allocation3], 1
    %s1141 = scalar_lea.sflag [#allocation3], 1
    %1142 = vsyncpa %s1141, 1
    %1143 = vsyncpa [#allocation4], 1
    %s1144 = scalar_lea.sflag [#allocation4], 1
    %1145 = vsyncpa %s1144, 1

</llo_original>
